<compile_context>
chip_gen: v6e
topology: v6e:2x2x1
jax: 0.10.0
libtpu: 0.0.40
codegen_flags: <defaults>
</compile_context>

<pallas_src>
import jax
import jax.numpy as jnp
from jax import lax
from jax.experimental import pallas as pl
from jax.experimental.pallas import tpu as pltpu

EPS = 1e-5  # PyTorch InstanceNorm2d default eps (affine=False by default)


def _decode_block_kernel(x_ref, w1_ref, w2_ref, o_ref, hp2_ref):
    # x_ref  : (1, H+2, W+2, Cin)   zero-padded input tile (one batch element)
    # w1_ref : (9*Cin, Cout)        fused (flipped) 3x3 stride-1 transposed-conv weight
    # w2_ref : (9*Cout, 4*Cout)     fused stride-2 transposed-conv weight (parity-blocked)
    # o_ref  : (1, HW, 4*Cout)      output, parity-grouped along lanes
    # hp2_ref: (H+2, W+2, Cout)     VMEM scratch holding zero-padded h1
    _, Hp, Wp, Cin = x_ref.shape
    H, W = Hp - 2, Wp - 2
    HW = H * W
    Cout = w1_ref.shape[1]

    # --- ReLU (zero padding is invariant under ReLU) ---------------------------
    xp = jnp.maximum(x_ref[0], 0.0)                      # (H+2, W+2, Cin)

    # --- ConvTranspose2d(Cin, Cout, k=3, s=1, p=1): single fused matmul --------
    cols1 = jnp.concatenate(
        [xp[kh:kh + H, kw:kw + W, :].reshape(HW, Cin)
         for kh in range(3) for kw in range(3)], axis=-1)          # (HW, 9*Cin)
    h1 = jnp.dot(cols1, w1_ref[...], preferred_element_type=jnp.float32)  # (HW, Cout)
    # (bias omitted: exactly cancelled by the following InstanceNorm, affine=False)

    # --- InstanceNorm2d (per channel over spatial, biased var) + ReLU ----------
    m1 = jnp.mean(h1, axis=0, keepdims=True)
    d1 = h1 - m1
    v1 = jnp.mean(d1 * d1, axis=0, keepdims=True)
    h1 = jnp.maximum(d1 * lax.rsqrt(v1 + EPS), 0.0)                # (HW, Cout)

    # --- zero-padded h1 in VMEM scratch (no functional .at[].set) --------------
    hp2_ref[...] = jnp.zeros_like(hp2_ref)
    hp2_ref[1:H + 1, 1:W + 1, :] = h1.reshape(H, W, Cout)

    # --- ConvTranspose2d(Cout, Cout, k=4, s=2, p=1): single fused matmul -------
    # 9 distinct shifts feed all 4 output parities; W2_fused zero-places each
    # parity's 4 taps into its own 8-column block -> result is (HW, 4*Cout).
    cols2 = jnp.concatenate(
        [hp2_ref[dh:dh + H, dw:dw + W, :].reshape(HW, Cout)
         for dh in range(3) for dw in range(3)], axis=-1)          # (HW, 9*Cout)
    y = jnp.dot(cols2, w2_ref[...], preferred_element_type=jnp.float32)  # (HW, 4*Cout)
    # (bias omitted: cancelled by the following InstanceNorm)

    # --- InstanceNorm2d over the full (2H, 2W) output (= union of parities) ----
    denom = 1.0 / (4.0 * HW)
    s = jnp.sum(y, axis=0, keepdims=True)                          # (1, 4*Cout)
    m2 = (s[:, 0:Cout] + s[:, Cout:2 * Cout]
          + s[:, 2 * Cout:3 * Cout] + s[:, 3 * Cout:4 * Cout]) * denom
    d2 = y - jnp.concatenate([m2, m2, m2, m2], axis=-1)
    sq = jnp.sum(d2 * d2, axis=0, keepdims=True)                   # (1, 4*Cout)
    v2 = (sq[:, 0:Cout] + sq[:, Cout:2 * Cout]
          + sq[:, 2 * Cout:3 * Cout] + sq[:, 3 * Cout:4 * Cout]) * denom
    inv = lax.rsqrt(v2 + EPS)
    yn = d2 * jnp.concatenate([inv, inv, inv, inv], axis=-1)       # (HW, 4*Cout)

    o_ref[0] = yn


def _build_w1_fused(w1):
    """w1: PyTorch ConvTranspose2d weight (Cin, Cout, 3, 3) -> (9*Cin, Cout)."""
    Cin, Cout = w1.shape[0], w1.shape[1]
    w1_flip = jnp.flip(w1, axis=(2, 3))                 # (Cin, Cout, kh, kw)
    w1_kkc = jnp.transpose(w1_flip, (2, 3, 0, 1))       # (kh, kw, Cin, Cout)
    return w1_kkc.reshape(9 * Cin, Cout).astype(jnp.float32)


def _build_w2_fused(w2):
    """w2: PyTorch ConvTranspose2d weight (Cout, Cout, 4, 4) -> (9*Cout, 4*Cout).

    Row block j = 3*(dh+1) + (dw+1) (spatial shift); column block p = 2*r + s
    (output parity). Each parity uses 4 of the 9 shifts; the rest stay zero.
    """
    C, Co = w2.shape[0], w2.shape[1]
    kh_tab = ((3, 1), (2, 0))
    W2 = jnp.zeros((9 * C, 4 * Co), jnp.float32)
    for r in range(2):
        for s in range(2):
            p = 2 * r + s
            for ih in range(2):
                dh = (ih - 1) if r == 0 else ih
                kh = kh_tab[r][ih]
                for iw in range(2):
                    dw = (iw - 1) if s == 0 else iw
                    kw = kh_tab[s][iw]
                    j = 3 * (dh + 1) + (dw + 1)
                    W2 = W2.at[j * C:(j + 1) * C, p * Co:(p + 1) * Co].set(
                        w2[:, :, kh, kw].astype(jnp.float32))
    return W2


def decode_block_pallas(x_nhwc, w1, b1, w2, b2):
    """x_nhwc: (N,H,W,Cin); w1:(Cin,Cout,3,3); w2:(Cout,Cout,4,4) (PyTorch layouts)."""
    N, H, W, Cin = x_nhwc.shape
    Cout = w1.shape[1]
    HW = H * W

    w1_fused = _build_w1_fused(w1)                      # (9*Cin, Cout)
    w2_fused = _build_w2_fused(w2)                      # (9*Cout, 4*Cout)
    # b1 / b2 are per-channel constants followed by InstanceNorm2d(affine=False),
    # which subtracts the per-channel spatial mean -> they cancel exactly.
    del b1, b2

    # Host-side zero pad (ReLU(0)=0, so pad-then-ReLU == ReLU-then-pad).
    x_pad = jnp.pad(x_nhwc.astype(jnp.float32), ((0, 0), (1, 1), (1, 1), (0, 0)))

    out = pl.pallas_call(
        _decode_block_kernel,
        out_shape=jax.ShapeDtypeStruct((N, HW, 4 * Cout), jnp.float32),
        grid=(N,),
        in_specs=[
            pl.BlockSpec((1, H + 2, W + 2, Cin), lambda n: (n, 0, 0, 0)),
            pl.BlockSpec((9 * Cin, Cout), lambda n: (0, 0)),
            pl.BlockSpec((9 * Cout, 4 * Cout), lambda n: (0, 0)),
        ],
        out_specs=pl.BlockSpec((1, HW, 4 * Cout), lambda n: (n, 0, 0)),
        scratch_shapes=[pltpu.VMEM((H + 2, W + 2, Cout), jnp.float32)],
        compiler_params=pltpu.CompilerParams(dimension_semantics=("parallel",)),
    )(x_pad, w1_fused, w2_fused)

    # Parity de-interleave (pure JAX glue):
    #   out[n, a*W+b, (2r+s)*Cout + c] -> y[n, 2a+r, 2b+s, c]
    out = out.reshape(N, H, W, 2, 2, Cout)
    out = jnp.transpose(out, (0, 1, 3, 2, 4, 5)).reshape(N, 2 * H, 2 * W, Cout)
    return out


# ------------------------- pure-JAX reference (NCHW) -------------------------
def _conv_transpose2d_ref(x, w, b, stride, padding):
    k = w.shape[-1]
    w_conv = jnp.transpose(jnp.flip(w, axis=(2, 3)), (1, 0, 2, 3))  # (Cout,Cin,k,k)
    pad = k - 1 - padding
    y = lax.conv_general_dilated(
        x, w_conv, window_strides=(1, 1), padding=[(pad, pad), (pad, pad)],
        lhs_dilation=(stride, stride),
        dimension_numbers=("NCHW", "OIHW", "NCHW"),
        precision=lax.Precision.HIGHEST)
    return y + b[None, :, None, None]


def _instance_norm_ref(x):
    mean = jnp.mean(x, axis=(2, 3), keepdims=True)
    var = jnp.mean((x - mean) ** 2, axis=(2, 3), keepdims=True)
    return (x - mean) * lax.rsqrt(var + EPS)


def decode_block_ref(x_nchw, w1, b1, w2, b2):
    h = jnp.maximum(x_nchw, 0.0)
    h = _conv_transpose2d_ref(h, w1, b1, 1, 1)
    h = _instance_norm_ref(h)
    h = jnp.maximum(h, 0.0)
    h = _conv_transpose2d_ref(h, w2, b2, 2, 1)
    return _instance_norm_ref(h)


if __name__ == "__main__":
    key = jax.random.PRNGKey(0)
    N, Cin, Cout, H, W = 2, 4, 8, 8, 8
    k0, k1, k2, k3, k4 = jax.random.split(key, 5)

    x_nchw = jax.random.normal(k0, (N, Cin, H, W), jnp.float32)
    # ConvTranspose2d weight layouts: (in_channels, out_channels, kH, kW)
    w1 = jax.random.normal(k1, (Cin, Cout, 3, 3), jnp.float32) * 0.1
    b1 = jax.random.normal(k2, (Cout,), jnp.float32) * 0.1
    w2 = jax.random.normal(k3, (Cout, Cout, 4, 4), jnp.float32) * 0.1
    b2 = jax.random.normal(k4, (Cout,), jnp.float32) * 0.1

    x_nhwc = jnp.transpose(x_nchw, (0, 2, 3, 1))
    out_nhwc = jax.block_until_ready(decode_block_pallas(x_nhwc, w1, b1, w2, b2))

    # Verify against the pure-JAX reference of the PyTorch forward.
    ref = decode_block_ref(x_nchw, w1, b1, w2, b2)
    got = jnp.transpose(out_nhwc, (0, 3, 1, 2))          # back to NCHW
    assert got.shape == (N, Cout, 2 * H, 2 * W), got.shape
    err = float(jnp.max(jnp.abs(got - ref)))
    assert err < 1e-3, f"max abs err {err}"
    print("KERNEL_OK")
</pallas_src>

<mosaic_0001>
module attributes {stable_mosaic.version = 11 : i64} {
  func.func @_decode_block_kernel(%arg0: i32, %arg1: memref<1x10x10x4xf32, #tpu.memory_space<vmem>>, %arg2: memref<36x8xf32, #tpu.memory_space<vmem>>, %arg3: memref<72x32xf32, #tpu.memory_space<vmem>>, %arg4: memref<1x64x32xf32, #tpu.memory_space<vmem>>, %arg5: memref<10x10x8xf32, #tpu.memory_space<vmem>>) attributes {dimension_semantics = [#tpu.dimension_semantics<parallel>], iteration_bounds = array<i64: 2>, scalar_prefetch = 0 : i64, scratch_operands = 1 : i64, tpu.core_type = #tpu.core_type<tc>, window_params = [{transform_indices = @transform_0, window_bounds = array<i64: 1, 10, 10, 4>}, {pipeline_mode = #tpu.pipeline_mode<synchronous>, transform_indices = @transform_1, window_bounds = array<i64: 36, 8>}, {pipeline_mode = #tpu.pipeline_mode<synchronous>, transform_indices = @transform_2, window_bounds = array<i64: 72, 32>}, {transform_indices = @transform_3, window_bounds = array<i64: 1, 64, 32>}]} {
    %c0 = arith.constant 0 : index
    %c0_0 = arith.constant 0 : index
    %c0_1 = arith.constant 0 : index
    %c0_2 = arith.constant 0 : index
    %0 = vector.load %arg1[%c0, %c0_0, %c0_1, %c0_2] : memref<1x10x10x4xf32, #tpu.memory_space<vmem>>, vector<1x10x10x4xf32>
    %1 = vector.shape_cast %0 : vector<1x10x10x4xf32> to vector<10x10x4xf32>
    %cst = arith.constant 0.000000e+00 : f32
    %2 = vector.broadcast %cst : f32 to vector<10x10x4xf32>
    %3 = arith.maximumf %1, %2 : vector<10x10x4xf32>
    %4 = vector.extract_strided_slice %3 {offsets = [0, 0, 0], sizes = [8, 8, 4], strides = [1, 1, 1]} : vector<10x10x4xf32> to vector<8x8x4xf32>
    %5 = vector.shape_cast %4 : vector<8x8x4xf32> to vector<64x4xf32>
    %6 = vector.extract_strided_slice %3 {offsets = [0, 1, 0], sizes = [8, 8, 4], strides = [1, 1, 1]} : vector<10x10x4xf32> to vector<8x8x4xf32>
    %7 = vector.shape_cast %6 : vector<8x8x4xf32> to vector<64x4xf32>
    %8 = vector.extract_strided_slice %3 {offsets = [0, 2, 0], sizes = [8, 8, 4], strides = [1, 1, 1]} : vector<10x10x4xf32> to vector<8x8x4xf32>
    %9 = vector.shape_cast %8 : vector<8x8x4xf32> to vector<64x4xf32>
    %10 = vector.extract_strided_slice %3 {offsets = [1, 0, 0], sizes = [8, 8, 4], strides = [1, 1, 1]} : vector<10x10x4xf32> to vector<8x8x4xf32>
    %11 = vector.shape_cast %10 : vector<8x8x4xf32> to vector<64x4xf32>
    %12 = vector.extract_strided_slice %3 {offsets = [1, 1, 0], sizes = [8, 8, 4], strides = [1, 1, 1]} : vector<10x10x4xf32> to vector<8x8x4xf32>
    %13 = vector.shape_cast %12 : vector<8x8x4xf32> to vector<64x4xf32>
    %14 = vector.extract_strided_slice %3 {offsets = [1, 2, 0], sizes = [8, 8, 4], strides = [1, 1, 1]} : vector<10x10x4xf32> to vector<8x8x4xf32>
    %15 = vector.shape_cast %14 : vector<8x8x4xf32> to vector<64x4xf32>
    %16 = vector.extract_strided_slice %3 {offsets = [2, 0, 0], sizes = [8, 8, 4], strides = [1, 1, 1]} : vector<10x10x4xf32> to vector<8x8x4xf32>
    %17 = vector.shape_cast %16 : vector<8x8x4xf32> to vector<64x4xf32>
    %18 = vector.extract_strided_slice %3 {offsets = [2, 1, 0], sizes = [8, 8, 4], strides = [1, 1, 1]} : vector<10x10x4xf32> to vector<8x8x4xf32>
    %19 = vector.shape_cast %18 : vector<8x8x4xf32> to vector<64x4xf32>
    %20 = vector.extract_strided_slice %3 {offsets = [2, 2, 0], sizes = [8, 8, 4], strides = [1, 1, 1]} : vector<10x10x4xf32> to vector<8x8x4xf32>
    %21 = vector.shape_cast %20 : vector<8x8x4xf32> to vector<64x4xf32>
    %22 = tpu.concatenate %5, %7, %9, %11, %13, %15, %17, %19, %21 in 1 : vector<64x4xf32>, vector<64x4xf32>, vector<64x4xf32>, vector<64x4xf32>, vector<64x4xf32>, vector<64x4xf32>, vector<64x4xf32>, vector<64x4xf32>, vector<64x4xf32> -> vector<64x36xf32>
    %c0_3 = arith.constant 0 : index
    %c0_4 = arith.constant 0 : index
    %23 = vector.load %arg2[%c0_3, %c0_4] : memref<36x8xf32, #tpu.memory_space<vmem>>, vector<36x8xf32>
    %cst_5 = arith.constant dense<0.000000e+00> : vector<64x8xf32>
    %24 = tpu.matmul %22, %23, %cst_5 {dimension_numbers = #tpu.dot_dimension_numbers<[1], [0], [0], [1], [0, 0, 1, 1], [], []>} : vector<64x36xf32>, vector<36x8xf32>, vector<64x8xf32> -> vector<64x8xf32>
    %cst_6 = arith.constant dense<0.000000e+00> : vector<8xf32>
    %25 = vector.multi_reduction <add>, %24, %cst_6 [0] : vector<64x8xf32> to vector<8xf32>
    %26 = vector.shape_cast %25 : vector<8xf32> to vector<1x8xf32>
    %cst_7 = arith.constant 6.400000e+01 : f32
    %27 = vector.broadcast %cst_7 : f32 to vector<1x8xf32>
    %28 = arith.divf %26, %27 : vector<1x8xf32>
    %29 = vector.broadcast %28 : vector<1x8xf32> to vector<64x8xf32>
    %30 = arith.subf %24, %29 : vector<64x8xf32>
    %31 = arith.mulf %30, %30 : vector<64x8xf32>
    %cst_8 = arith.constant dense<0.000000e+00> : vector<8xf32>
    %32 = vector.multi_reduction <add>, %31, %cst_8 [0] : vector<64x8xf32> to vector<8xf32>
    %33 = vector.shape_cast %32 : vector<8xf32> to vector<1x8xf32>
    %cst_9 = arith.constant 6.400000e+01 : f32
    %34 = vector.broadcast %cst_9 : f32 to vector<1x8xf32>
    %35 = arith.divf %33, %34 : vector<1x8xf32>
    %cst_10 = arith.constant 9.99999974E-6 : f32
    %36 = vector.broadcast %cst_10 : f32 to vector<1x8xf32>
    %37 = arith.addf %35, %36 : vector<1x8xf32>
    %38 = math.rsqrt %37 : vector<1x8xf32>
    %39 = vector.broadcast %38 : vector<1x8xf32> to vector<64x8xf32>
    %40 = arith.mulf %30, %39 : vector<64x8xf32>
    %cst_11 = arith.constant 0.000000e+00 : f32
    %41 = vector.broadcast %cst_11 : f32 to vector<64x8xf32>
    %42 = arith.maximumf %40, %41 : vector<64x8xf32>
    %cst_12 = arith.constant 0.000000e+00 : f32
    %43 = vector.broadcast %cst_12 : f32 to vector<10x10x8xf32>
    %c0_13 = arith.constant 0 : index
    %c0_14 = arith.constant 0 : index
    %c0_15 = arith.constant 0 : index
    %44 = vector.load %arg5[%c0_13, %c0_14, %c0_15] : memref<10x10x8xf32, #tpu.memory_space<vmem>>, vector<10x10x8xf32>
    tpu.vector_store %arg5[%c0_13, %c0_14, %c0_15], %43 {strides = array<i32>} : memref<10x10x8xf32, #tpu.memory_space<vmem>>, vector<10x10x8xf32>,
    %45 = vector.shape_cast %42 : vector<64x8xf32> to vector<8x8x8xf32>
    %c1 = arith.constant 1 : index
    %c1_16 = arith.constant 1 : index
    %c0_17 = arith.constant 0 : index
    %46 = vector.load %arg5[%c1, %c1_16, %c0_17] : memref<10x10x8xf32, #tpu.memory_space<vmem>>, vector<8x8x8xf32>
    tpu.vector_store %arg5[%c1, %c1_16, %c0_17], %45 {strides = array<i32>} : memref<10x10x8xf32, #tpu.memory_space<vmem>>, vector<8x8x8xf32>,
    %c0_18 = arith.constant 0 : index
    %c0_19 = arith.constant 0 : index
    %c0_20 = arith.constant 0 : index
    %47 = vector.load %arg5[%c0_18, %c0_19, %c0_20] : memref<10x10x8xf32, #tpu.memory_space<vmem>>, vector<8x8x8xf32>
    %48 = vector.shape_cast %47 : vector<8x8x8xf32> to vector<64x8xf32>
    %c0_21 = arith.constant 0 : index
    %c1_22 = arith.constant 1 : index
    %c0_23 = arith.constant 0 : index
    %49 = vector.load %arg5[%c0_21, %c1_22, %c0_23] : memref<10x10x8xf32, #tpu.memory_space<vmem>>, vector<8x8x8xf32>
    %50 = vector.shape_cast %49 : vector<8x8x8xf32> to vector<64x8xf32>
    %c0_24 = arith.constant 0 : index
    %c2 = arith.constant 2 : index
    %c0_25 = arith.constant 0 : index
    %51 = vector.load %arg5[%c0_24, %c2, %c0_25] : memref<10x10x8xf32, #tpu.memory_space<vmem>>, vector<8x8x8xf32>
    %52 = vector.shape_cast %51 : vector<8x8x8xf32> to vector<64x8xf32>
    %c1_26 = arith.constant 1 : index
    %c0_27 = arith.constant 0 : index
    %c0_28 = arith.constant 0 : index
    %53 = vector.load %arg5[%c1_26, %c0_27, %c0_28] : memref<10x10x8xf32, #tpu.memory_space<vmem>>, vector<8x8x8xf32>
    %54 = vector.shape_cast %53 : vector<8x8x8xf32> to vector<64x8xf32>
    %c1_29 = arith.constant 1 : index
    %c1_30 = arith.constant 1 : index
    %c0_31 = arith.constant 0 : index
    %55 = vector.load %arg5[%c1_29, %c1_30, %c0_31] : memref<10x10x8xf32, #tpu.memory_space<vmem>>, vector<8x8x8xf32>
    %56 = vector.shape_cast %55 : vector<8x8x8xf32> to vector<64x8xf32>
    %c1_32 = arith.constant 1 : index
    %c2_33 = arith.constant 2 : index
    %c0_34 = arith.constant 0 : index
    %57 = vector.load %arg5[%c1_32, %c2_33, %c0_34] : memref<10x10x8xf32, #tpu.memory_space<vmem>>, vector<8x8x8xf32>
    %58 = vector.shape_cast %57 : vector<8x8x8xf32> to vector<64x8xf32>
    %c2_35 = arith.constant 2 : index
    %c0_36 = arith.constant 0 : index
    %c0_37 = arith.constant 0 : index
    %59 = vector.load %arg5[%c2_35, %c0_36, %c0_37] : memref<10x10x8xf32, #tpu.memory_space<vmem>>, vector<8x8x8xf32>
    %60 = vector.shape_cast %59 : vector<8x8x8xf32> to vector<64x8xf32>
    %c2_38 = arith.constant 2 : index
    %c1_39 = arith.constant 1 : index
    %c0_40 = arith.constant 0 : index
    %61 = vector.load %arg5[%c2_38, %c1_39, %c0_40] : memref<10x10x8xf32, #tpu.memory_space<vmem>>, vector<8x8x8xf32>
    %62 = vector.shape_cast %61 : vector<8x8x8xf32> to vector<64x8xf32>
    %c2_41 = arith.constant 2 : index
    %c2_42 = arith.constant 2 : index
    %c0_43 = arith.constant 0 : index
    %63 = vector.load %arg5[%c2_41, %c2_42, %c0_43] : memref<10x10x8xf32, #tpu.memory_space<vmem>>, vector<8x8x8xf32>
    %64 = vector.shape_cast %63 : vector<8x8x8xf32> to vector<64x8xf32>
    %65 = tpu.concatenate %48, %50, %52, %54, %56, %58, %60, %62, %64 in 1 : vector<64x8xf32>, vector<64x8xf32>, vector<64x8xf32>, vector<64x8xf32>, vector<64x8xf32>, vector<64x8xf32>, vector<64x8xf32>, vector<64x8xf32>, vector<64x8xf32> -> vector<64x72xf32>
    %c0_44 = arith.constant 0 : index
    %c0_45 = arith.constant 0 : index
    %66 = vector.load %arg3[%c0_44, %c0_45] : memref<72x32xf32, #tpu.memory_space<vmem>>, vector<72x32xf32>
    %cst_46 = arith.constant dense<0.000000e+00> : vector<64x32xf32>
    %67 = tpu.matmul %65, %66, %cst_46 {dimension_numbers = #tpu.dot_dimension_numbers<[1], [0], [0], [1], [0, 0, 1, 1], [], []>} : vector<64x72xf32>, vector<72x32xf32>, vector<64x32xf32> -> vector<64x32xf32>
    %cst_47 = arith.constant dense<0.000000e+00> : vector<32xf32>
    %68 = vector.multi_reduction <add>, %67, %cst_47 [0] : vector<64x32xf32> to vector<32xf32>
    %69 = vector.shape_cast %68 : vector<32xf32> to vector<1x32xf32>
    %70 = vector.extract_strided_slice %69 {offsets = [0, 0], sizes = [1, 8], strides = [1, 1]} : vector<1x32xf32> to vector<1x8xf32>
    %71 = vector.extract_strided_slice %69 {offsets = [0, 8], sizes = [1, 8], strides = [1, 1]} : vector<1x32xf32> to vector<1x8xf32>
    %72 = arith.addf %70, %71 : vector<1x8xf32>
    %73 = vector.extract_strided_slice %69 {offsets = [0, 16], sizes = [1, 8], strides = [1, 1]} : vector<1x32xf32> to vector<1x8xf32>
    %74 = arith.addf %72, %73 : vector<1x8xf32>
    %75 = vector.extract_strided_slice %69 {offsets = [0, 24], sizes = [1, 8], strides = [1, 1]} : vector<1x32xf32> to vector<1x8xf32>
    %76 = arith.addf %74, %75 : vector<1x8xf32>
    %cst_48 = arith.constant 3.906250e-03 : f32
    %77 = vector.broadcast %cst_48 : f32 to vector<1x8xf32>
    %78 = arith.mulf %76, %77 : vector<1x8xf32>
    %79 = tpu.concatenate %78, %78, %78, %78 in 1 : vector<1x8xf32>, vector<1x8xf32>, vector<1x8xf32>, vector<1x8xf32> -> vector<1x32xf32>
    %80 = vector.broadcast %79 : vector<1x32xf32> to vector<64x32xf32>
    %81 = arith.subf %67, %80 : vector<64x32xf32>
    %82 = arith.mulf %81, %81 : vector<64x32xf32>
    %cst_49 = arith.constant dense<0.000000e+00> : vector<32xf32>
    %83 = vector.multi_reduction <add>, %82, %cst_49 [0] : vector<64x32xf32> to vector<32xf32>
    %84 = vector.shape_cast %83 : vector<32xf32> to vector<1x32xf32>
    %85 = vector.extract_strided_slice %84 {offsets = [0, 0], sizes = [1, 8], strides = [1, 1]} : vector<1x32xf32> to vector<1x8xf32>
    %86 = vector.extract_strided_slice %84 {offsets = [0, 8], sizes = [1, 8], strides = [1, 1]} : vector<1x32xf32> to vector<1x8xf32>
    %87 = arith.addf %85, %86 : vector<1x8xf32>
    %88 = vector.extract_strided_slice %84 {offsets = [0, 16], sizes = [1, 8], strides = [1, 1]} : vector<1x32xf32> to vector<1x8xf32>
    %89 = arith.addf %87, %88 : vector<1x8xf32>
    %90 = vector.extract_strided_slice %84 {offsets = [0, 24], sizes = [1, 8], strides = [1, 1]} : vector<1x32xf32> to vector<1x8xf32>
    %91 = arith.addf %89, %90 : vector<1x8xf32>
    %cst_50 = arith.constant 3.906250e-03 : f32
    %92 = vector.broadcast %cst_50 : f32 to vector<1x8xf32>
    %93 = arith.mulf %91, %92 : vector<1x8xf32>
    %cst_51 = arith.constant 9.99999974E-6 : f32
    %94 = vector.broadcast %cst_51 : f32 to vector<1x8xf32>
    %95 = arith.addf %93, %94 : vector<1x8xf32>
    %96 = math.rsqrt %95 : vector<1x8xf32>
    %97 = tpu.concatenate %96, %96, %96, %96 in 1 : vector<1x8xf32>, vector<1x8xf32>, vector<1x8xf32>, vector<1x8xf32> -> vector<1x32xf32>
    %98 = vector.broadcast %97 : vector<1x32xf32> to vector<64x32xf32>
    %99 = arith.mulf %81, %98 : vector<64x32xf32>
    %c0_52 = arith.constant 0 : index
    %c0_53 = arith.constant 0 : index
    %c0_54 = arith.constant 0 : index
    %100 = vector.load %arg4[%c0_52, %c0_53, %c0_54] : memref<1x64x32xf32, #tpu.memory_space<vmem>>, vector<1x64x32xf32>
    %101 = vector.shape_cast %100 : vector<1x64x32xf32> to vector<64x32xf32>
    %102 = vector.shape_cast %99 : vector<64x32xf32> to vector<1x64x32xf32>
    tpu.vector_store %arg4[%c0_52, %c0_53, %c0_54], %102 {strides = array<i32>} : memref<1x64x32xf32, #tpu.memory_space<vmem>>, vector<1x64x32xf32>,
    return
  }
  func.func @transform_0(%arg0: i32) -> (i32, i32, i32, i32) {
    %c0_i32 = arith.constant 0 : i32
    %c0_i32_0 = arith.constant 0 : i32
    %c0_i32_1 = arith.constant 0 : i32
    %c0_i32_2 = arith.constant 0 : i32
    return %arg0, %c0_i32, %c0_i32_0, %c0_i32_1 : i32, i32, i32, i32
  }
  func.func @transform_1(%arg0: i32) -> (i32, i32) {
    %c0_i32 = arith.constant 0 : i32
    %c0_i32_0 = arith.constant 0 : i32
    %c0_i32_1 = arith.constant 0 : i32
    return %c0_i32, %c0_i32_0 : i32, i32
  }
  func.func @transform_2(%arg0: i32) -> (i32, i32) {
    %c0_i32 = arith.constant 0 : i32
    %c0_i32_0 = arith.constant 0 : i32
    %c0_i32_1 = arith.constant 0 : i32
    return %c0_i32, %c0_i32_0 : i32, i32
  }
  func.func @transform_3(%arg0: i32) -> (i32, i32, i32) {
    %c0_i32 = arith.constant 0 : i32
    %c0_i32_0 = arith.constant 0 : i32
    %c0_i32_1 = arith.constant 0 : i32
    return %arg0, %c0_i32, %c0_i32_0 : i32, i32, i32
  }
}

</mosaic_0001>

<llo_original>
// kernel: tpu_custom_call.1
$region0: #{tpu_custom_call.1}
  #allocation0 [shape = 'u32[]', space=smem, size = 0x4, offset = 0x4, fixed_abs, tag = 'smem constant byte address 0x4 - core index']
  #allocation1 [shape = 'u32[144,128]{1,0:T(1,128)}', space=vmem, size = 0x12000, scoped, tag = 'internal scratch']
  #allocation2 [shape = 'f32[10,10,8]{2,1,0:T(8,128)}', space=vmem, size = 0x14000, scoped, tag = 'scratch operand']
  %s0 = inlined_call_operand.vmem [shape: f32[2,10,10,4], index: 0, kind: input, shape index: {}]
  %s1 = inlined_call_operand.vmem [shape: f32[36,8], index: 1, kind: input, shape index: {}]
  %s2 = inlined_call_operand.vmem [shape: f32[72,32], index: 2, kind: input, shape index: {}]
  %s3 = inlined_call_operand.vmem [shape: f32[2,64,32], index: 3, kind: output, shape index: {}]
  %s4 = sld [smem:[#allocation0]]
  $region45: #{tpu_custom_call.1} parent=0
    _
  %s6 = ssub.s32 1, %s4
  %s7 = scalar_select 0, %s6, %s4
  loop: start=0, step=1, limit=4
  $region2: #{tpu_custom_call.1} parent=0 // loop_pre_header
    _
  $region3: #{tpu_custom_call.1} parent=0 // loop_header
    %s9 = sphi 0, %s13
    %p10 = scmp.ge.s32.totalorder %s9, 4
    %s19 = sphi 0, %s21
    %s22 = sphi 0, %s19
    %s23 = sphi 0, %s22
    %s39 = sphi 0, %s23
    %s43 = sphi 0, %s43
    %s45 = sphi 0, %s43
    %s46 = sphi 0, %s45
    %s60 = sphi 0, %s46
    %s64 = sphi 0, %s64
    %s66 = sphi 0, %s64
    %s67 = sphi 0, %s66
    %s81 = sphi 0, %s67
    %s87 = sphi 0, %s89
    %s90 = sphi 0, %s87
    %s91 = sphi 0, %s90
    %s107 = sphi 0, %s91
  $region4: #{tpu_custom_call.1} parent=0 // loop_header_branch
    %12 = sbr.rel (%p10) target = $region8
  $region5: #{tpu_custom_call.1} parent=0 // loop_body
    %s14 = ssub.s32 %s9, 1
    %s15 = ssub.s32 %s9, 2
    %s16 = sadd.s32 %s9, 1
    %s17 = ssub.s32 %s9, %s16
    %p18 = scmp.eq.s32.totalorder %s17, 0
    %s20 = sadd.s32 %s19, 1
    %s21 = scalar_select %p18, %s19, %s20
    %p24 = pneg %p18
    %p25 = scmp.eq.s32.totalorder %s9, 1
    %p26 = por %p24, %p25
    %p27 = scmp.ne.s32.totalorder %s19, %s22
    %p28 = scmp.eq.s32.totalorder %s9, 0
    %p29 = por %p27, %p28
    %p30 = scmp.ne.s32.totalorder %s19, %s22
    %p31 = scmp.eq.s32.totalorder %s14, 1
    %p32 = por %p30, %p31
    %p33 = scmp.ne.s32.totalorder %s22, %s23
    %p34 = scmp.eq.s32.totalorder %s14, 0
    %p35 = por %p33, %p34
    %p36 = scmp.ne.s32.totalorder %s22, %s23
    %p37 = scmp.eq.s32.totalorder %s15, 1
    %p38 = por %p36, %p37
    %p40 = scmp.ne.s32.totalorder %s23, %s39
    %p41 = scmp.eq.s32.totalorder %s15, 0
    %p42 = por %p40, %p41
    %s44 = sadd.s32 %s43, 1
    %p47 = scmp.eq.s32.totalorder %s9, 1
    %p48 = scmp.ne.s32.totalorder %s43, %s45
    %p49 = scmp.eq.s32.totalorder %s9, 0
    %p50 = por %p48, %p49
    %p51 = scmp.ne.s32.totalorder %s43, %s45
    %p52 = scmp.eq.s32.totalorder %s14, 1
    %p53 = por %p51, %p52
    %p54 = scmp.ne.s32.totalorder %s45, %s46
    %p55 = scmp.eq.s32.totalorder %s14, 0
    %p56 = por %p54, %p55
    %p57 = scmp.ne.s32.totalorder %s45, %s46
    %p58 = scmp.eq.s32.totalorder %s15, 1
    %p59 = por %p57, %p58
    %p61 = scmp.ne.s32.totalorder %s46, %s60
    %p62 = scmp.eq.s32.totalorder %s15, 0
    %p63 = por %p61, %p62
    %s65 = sadd.s32 %s64, 1
    %p68 = scmp.eq.s32.totalorder %s9, 1
    %p69 = scmp.ne.s32.totalorder %s64, %s66
    %p70 = scmp.eq.s32.totalorder %s9, 0
    %p71 = por %p69, %p70
    %p72 = scmp.ne.s32.totalorder %s64, %s66
    %p73 = scmp.eq.s32.totalorder %s14, 1
    %p74 = por %p72, %p73
    %p75 = scmp.ne.s32.totalorder %s66, %s67
    %p76 = scmp.eq.s32.totalorder %s14, 0
    %p77 = por %p75, %p76
    %p78 = scmp.ne.s32.totalorder %s66, %s67
    %p79 = scmp.eq.s32.totalorder %s15, 1
    %p80 = por %p78, %p79
    %p82 = scmp.ne.s32.totalorder %s67, %s81
    %p83 = scmp.eq.s32.totalorder %s15, 0
    %p84 = por %p82, %p83
    %s85 = ssub.s32 %s9, %s16
    %p86 = scmp.eq.s32.totalorder %s85, 0
    %s88 = sadd.s32 %s87, 1
    %s89 = scalar_select %p86, %s87, %s88
    %p92 = pneg %p86
    %p93 = scmp.eq.s32.totalorder %s9, 1
    %p94 = por %p92, %p93
    %p95 = scmp.ne.s32.totalorder %s87, %s90
    %p96 = scmp.eq.s32.totalorder %s9, 0
    %p97 = por %p95, %p96
    %p98 = scmp.ne.s32.totalorder %s87, %s90
    %p99 = scmp.eq.s32.totalorder %s14, 1
    %p100 = por %p98, %p99
    %p101 = scmp.ne.s32.totalorder %s90, %s91
    %p102 = scmp.eq.s32.totalorder %s14, 0
    %p103 = por %p101, %p102
    %p104 = scmp.ne.s32.totalorder %s90, %s91
    %p105 = scmp.eq.s32.totalorder %s15, 1
    %p106 = por %p104, %p105
    %p108 = scmp.ne.s32.totalorder %s91, %s107
    %p109 = scmp.eq.s32.totalorder %s15, 0
    %p110 = por %p108, %p109
    %p111 = scmp.le.s32.totalorder 1, %s9
    %p112 = scmp.lt.s32.totalorder %s9, 3
    %p113 = pnand %p111, %p112
    %p114 = pneg %p113
    // Predicated region
    $region9: #{tpu_custom_call.1} parent=5 // pred_check
      _
    $region10: #{tpu_custom_call.1} parent=5 // pred_check_branch
      %116 = sbr.rel (%p113) target = $region12
    $region11: #{tpu_custom_call.1} parent=5 // pred_region
      %s117 = ssub.s32 %s9, 1
      // Predicated region
      $region13: #{tpu_custom_call.1} parent=11 // pred_check
        %p118 = pneg %p56
      $region14: #{tpu_custom_call.1} parent=11 // pred_check_branch
        %120 = sbr.rel (%p118) target = $region16
      $region15: #{tpu_custom_call.1} parent=11 // pred_region
        _
      $region16: #{tpu_custom_call.1} parent=11 // pred_fallthru
        _
      // Predicated region
      $region17: #{tpu_custom_call.1} parent=11 // pred_check
        %p121 = pneg %p77
      $region18: #{tpu_custom_call.1} parent=11 // pred_check_branch
        %123 = sbr.rel (%p121) target = $region20
      $region19: #{tpu_custom_call.1} parent=11 // pred_region
        _
      $region20: #{tpu_custom_call.1} parent=11 // pred_fallthru
        _
    $region12: #{tpu_custom_call.1} parent=5 // pred_fallthru
      _
    %p124 = scmp.lt.s32.totalorder %s9, 2
    // Predicated region
    $region21: #{tpu_custom_call.1} parent=5 // pred_check
      %p125 = pneg %p124
    $region22: #{tpu_custom_call.1} parent=5 // pred_check_branch
      %127 = sbr.rel (%p125) target = $region24
    $region23: #{tpu_custom_call.1} parent=5 // pred_region
      // Predicated region
      $region25: #{tpu_custom_call.1} parent=23 // pred_check
        %p128 = pneg %p29
      $region26: #{tpu_custom_call.1} parent=23 // pred_check_branch
        %130 = sbr.rel (%p128) target = $region28
      $region27: #{tpu_custom_call.1} parent=23 // pred_region
        %p131 = scmp.lt.s32.totalorder %s9, 1
        %s132 = scalar_select %p131, %s9, 1
        %s133 = smul.addr %s132, 20
        %s134 = smul.addr %s133, 8
        %s135 = scalar_lea.vmem %s0, %s134
      $region28: #{tpu_custom_call.1} parent=23 // pred_fallthru
        _
    $region24: #{tpu_custom_call.1} parent=5 // pred_fallthru
      _
    %p136 = scmp.le.s32.totalorder 1, %s9
    %p137 = scmp.lt.s32.totalorder %s9, 3
    %p138 = pnand %p136, %p137
    %p139 = pneg %p138
    // Predicated region
    $region29: #{tpu_custom_call.1} parent=5 // pred_check
      _
    $region30: #{tpu_custom_call.1} parent=5 // pred_check_branch
      %141 = sbr.rel (%p138) target = $region32
    $region31: #{tpu_custom_call.1} parent=5 // pred_region
      %s142 = ssub.s32 %s9, 1
      %p143 = scmp.lt.s32.totalorder %s14, 1
      %s144 = scalar_select %p143, %s14, 1
      %s145 = smul.addr %s144, 20
      %s146 = smul.addr %s145, 8
      %s147 = scalar_lea.vmem %s0, %s146
      %p148 = pneg %p35
      %p149 = pneg %p32
      %p150 = pneg %p56
      %p151 = pneg %p53
      %p152 = pneg %p77
      %p153 = pneg %p74
      %p154 = pneg %p103
      %p155 = pneg %p100
      %p156 = scmp.lt.s32.totalorder %s14, 1
      %s157 = scalar_select %p156, %s14, 1
      %s158 = smul.addr %s157, 8
      %s159 = smul.addr %s158, 8
      %s160 = scalar_lea.vmem %s3, %s159
      %p161 = scmp.lt.s32.totalorder %s14, 1
      %s162 = scalar_select %p161, %s14, 1
      %s163 = smul.addr %s162, 20
      %s164 = smul.addr %s163, 8
      %s165 = scalar_lea.vmem %s0, %s164
      %p166 = scmp.lt.s32.totalorder %s14, 1
      %s167 = scalar_select %p166, %s14, 1
      %s168 = smul.addr %s167, 8
      %s169 = smul.addr %s168, 8
      %s170 = scalar_lea.vmem %s3, %s169
      %v171 = vld [vmem:[%s165] sm:$0xff]
      %v172 = vld [vmem:[%s165 + $0x8] sm:$0x3]
      %v173 = vld [vmem:[%s165 + $0x10] sm:$0xff]
      %v174 = vld [vmem:[%s165 + $0x18] sm:$0x3]
      %v175 = vld [vmem:[%s165 + $0x20] sm:$0xff]
      %v176 = vld [vmem:[%s165 + $0x28] sm:$0x3]
      %v177 = vld [vmem:[%s165 + $0x30] sm:$0xff]
      %v178 = vld [vmem:[%s165 + $0x38] sm:$0x3]
      %v179 = vld [vmem:[%s165 + $0x40] sm:$0xff]
      %v180 = vld [vmem:[%s165 + $0x48] sm:$0x3]
      %v181 = vld [vmem:[%s165 + $0x50] sm:$0xff]
      %v182 = vld [vmem:[%s165 + $0x58] sm:$0x3]
      %v183 = vld [vmem:[%s165 + $0x60] sm:$0xff]
      %v184 = vld [vmem:[%s165 + $0x68] sm:$0x3]
      %v185 = vld [vmem:[%s165 + $0x70] sm:$0xff]
      %v186 = vld [vmem:[%s165 + $0x78] sm:$0x3]
      %v187 = vld [vmem:[%s165 + $0x80] sm:$0xff]
      %v188 = vld [vmem:[%s165 + $0x88] sm:$0x3]
      %v189 = vld [vmem:[%s165 + $0x90] sm:$0xff]
      %v190 = vld [vmem:[%s165 + $0x98] sm:$0x3]
      %v191 = vmax.f32 %v171, 0.0
      %v192 = vmax.f32 %v172, 0.0
      %v193 = vmax.f32 %v173, 0.0
      %v194 = vmax.f32 %v174, 0.0
      %v195 = vmax.f32 %v175, 0.0
      %v196 = vmax.f32 %v176, 0.0
      %v197 = vmax.f32 %v177, 0.0
      %v198 = vmax.f32 %v178, 0.0
      %v199 = vmax.f32 %v179, 0.0
      %v200 = vmax.f32 %v180, 0.0
      %v201 = vmax.f32 %v181, 0.0
      %v202 = vmax.f32 %v182, 0.0
      %v203 = vmax.f32 %v183, 0.0
      %v204 = vmax.f32 %v184, 0.0
      %v205 = vmax.f32 %v185, 0.0
      %v206 = vmax.f32 %v186, 0.0
      %v207 = vmax.f32 %v187, 0.0
      %v208 = vmax.f32 %v188, 0.0
      %v209 = vmax.f32 %v189, 0.0
      %v210 = vmax.f32 %v190, 0.0
      %vm227 = vcmask 1046528
      %v228 = vrot.slane %v191, 1
      %v229 = vrot.slane %v192, 1
      %v230 = vsel %vm227, %v228, %v229
      %v231 = vrot.slane %v193, 1
      %v232 = vrot.slane %v194, 1
      %v233 = vsel %vm227, %v231, %v232
      %v234 = vrot.slane %v195, 1
      %v235 = vrot.slane %v196, 1
      %v236 = vsel %vm227, %v234, %v235
      %v237 = vrot.slane %v197, 1
      %v238 = vrot.slane %v198, 1
      %v239 = vsel %vm227, %v237, %v238
      %v240 = vrot.slane %v199, 1
      %v241 = vrot.slane %v200, 1
      %v242 = vsel %vm227, %v240, %v241
      %v243 = vrot.slane %v201, 1
      %v244 = vrot.slane %v202, 1
      %v245 = vsel %vm227, %v243, %v244
      %v246 = vrot.slane %v203, 1
      %v247 = vrot.slane %v204, 1
      %v248 = vsel %vm227, %v246, %v247
      %v249 = vrot.slane %v205, 1
      %v250 = vrot.slane %v206, 1
      %v251 = vsel %vm227, %v249, %v250
      %vm252 = vcmask 1045504
      %v253 = vrot.slane %v191, 2
      %v254 = vrot.slane %v192, 2
      %v255 = vsel %vm252, %v253, %v254
      %v256 = vrot.slane %v193, 2
      %v257 = vrot.slane %v194, 2
      %v258 = vsel %vm252, %v256, %v257
      %v259 = vrot.slane %v195, 2
      %v260 = vrot.slane %v196, 2
      %v261 = vsel %vm252, %v259, %v260
      %v262 = vrot.slane %v197, 2
      %v263 = vrot.slane %v198, 2
      %v264 = vsel %vm252, %v262, %v263
      %v265 = vrot.slane %v199, 2
      %v266 = vrot.slane %v200, 2
      %v267 = vsel %vm252, %v265, %v266
      %v268 = vrot.slane %v201, 2
      %v269 = vrot.slane %v202, 2
      %v270 = vsel %vm252, %v268, %v269
      %v271 = vrot.slane %v203, 2
      %v272 = vrot.slane %v204, 2
      %v273 = vsel %vm252, %v271, %v272
      %v274 = vrot.slane %v205, 2
      %v275 = vrot.slane %v206, 2
      %v276 = vsel %vm252, %v274, %v275
      %v279 = vrot.slane %v207, 1
      %v280 = vrot.slane %v208, 1
      %v281 = vsel %vm227, %v279, %v280
      %v282 = vrot.slane %v207, 2
      %v283 = vrot.slane %v208, 2
      %v284 = vsel %vm252, %v282, %v283
      %v287 = vrot.slane %v209, 1
      %v288 = vrot.slane %v210, 1
      %v289 = vsel %vm227, %v287, %v288
      %v290 = vrot.slane %v209, 2
      %v291 = vrot.slane %v210, 2
      %v292 = vsel %vm252, %v290, %v291
      %293 = vrot.lane.b32.xlu0 %v230, 4
      %v294 = vpop.permute.xlu0 %293
      %295 = vrot.lane.b32.xlu0 %v233, 4
      %v296 = vpop.permute.xlu0 %295
      %297 = vrot.lane.b32.xlu0 %v236, 4
      %v298 = vpop.permute.xlu0 %297
      %299 = vrot.lane.b32.xlu0 %v239, 4
      %v300 = vpop.permute.xlu0 %299
      %301 = vrot.lane.b32.xlu0 %v242, 4
      %v302 = vpop.permute.xlu0 %301
      %303 = vrot.lane.b32.xlu0 %v245, 4
      %v304 = vpop.permute.xlu0 %303
      %305 = vrot.lane.b32.xlu0 %v248, 4
      %v306 = vpop.permute.xlu0 %305
      %307 = vrot.lane.b32.xlu0 %v251, 4
      %v308 = vpop.permute.xlu0 %307
      %317 = vrot.lane.b32.xlu0 %v255, 8
      %v318 = vpop.permute.xlu0 %317
      %319 = vrot.lane.b32.xlu0 %v258, 8
      %v320 = vpop.permute.xlu0 %319
      %321 = vrot.lane.b32.xlu0 %v261, 8
      %v322 = vpop.permute.xlu0 %321
      %323 = vrot.lane.b32.xlu0 %v264, 8
      %v324 = vpop.permute.xlu0 %323
      %325 = vrot.lane.b32.xlu0 %v267, 8
      %v326 = vpop.permute.xlu0 %325
      %327 = vrot.lane.b32.xlu0 %v270, 8
      %v328 = vpop.permute.xlu0 %327
      %329 = vrot.lane.b32.xlu0 %v273, 8
      %v330 = vpop.permute.xlu0 %329
      %331 = vrot.lane.b32.xlu0 %v276, 8
      %v332 = vpop.permute.xlu0 %331
      %341 = vrot.lane.b32.xlu0 %v193, 12
      %v342 = vpop.permute.xlu0 %341
      %343 = vrot.lane.b32.xlu0 %v195, 12
      %v344 = vpop.permute.xlu0 %343
      %345 = vrot.lane.b32.xlu0 %v197, 12
      %v346 = vpop.permute.xlu0 %345
      %347 = vrot.lane.b32.xlu0 %v199, 12
      %v348 = vpop.permute.xlu0 %347
      %349 = vrot.lane.b32.xlu0 %v201, 12
      %v350 = vpop.permute.xlu0 %349
      %351 = vrot.lane.b32.xlu0 %v203, 12
      %v352 = vpop.permute.xlu0 %351
      %353 = vrot.lane.b32.xlu0 %v205, 12
      %v354 = vpop.permute.xlu0 %353
      %355 = vrot.lane.b32.xlu0 %v207, 12
      %v356 = vpop.permute.xlu0 %355
      %365 = vrot.lane.b32.xlu0 %v233, 16
      %v366 = vpop.permute.xlu0 %365
      %367 = vrot.lane.b32.xlu0 %v236, 16
      %v368 = vpop.permute.xlu0 %367
      %369 = vrot.lane.b32.xlu0 %v239, 16
      %v370 = vpop.permute.xlu0 %369
      %371 = vrot.lane.b32.xlu0 %v242, 16
      %v372 = vpop.permute.xlu0 %371
      %373 = vrot.lane.b32.xlu0 %v245, 16
      %v374 = vpop.permute.xlu0 %373
      %375 = vrot.lane.b32.xlu0 %v248, 16
      %v376 = vpop.permute.xlu0 %375
      %377 = vrot.lane.b32.xlu0 %v251, 16
      %v378 = vpop.permute.xlu0 %377
      %379 = vrot.lane.b32.xlu0 %v281, 16
      %v380 = vpop.permute.xlu0 %379
      %389 = vrot.lane.b32.xlu0 %v258, 20
      %v390 = vpop.permute.xlu0 %389
      %391 = vrot.lane.b32.xlu0 %v261, 20
      %v392 = vpop.permute.xlu0 %391
      %393 = vrot.lane.b32.xlu0 %v264, 20
      %v394 = vpop.permute.xlu0 %393
      %395 = vrot.lane.b32.xlu0 %v267, 20
      %v396 = vpop.permute.xlu0 %395
      %397 = vrot.lane.b32.xlu0 %v270, 20
      %v398 = vpop.permute.xlu0 %397
      %399 = vrot.lane.b32.xlu0 %v273, 20
      %v400 = vpop.permute.xlu0 %399
      %401 = vrot.lane.b32.xlu0 %v276, 20
      %v402 = vpop.permute.xlu0 %401
      %403 = vrot.lane.b32.xlu0 %v284, 20
      %v404 = vpop.permute.xlu0 %403
      %413 = vrot.lane.b32.xlu0 %v195, 24
      %v414 = vpop.permute.xlu0 %413
      %415 = vrot.lane.b32.xlu0 %v197, 24
      %v416 = vpop.permute.xlu0 %415
      %417 = vrot.lane.b32.xlu0 %v199, 24
      %v418 = vpop.permute.xlu0 %417
      %419 = vrot.lane.b32.xlu0 %v201, 24
      %v420 = vpop.permute.xlu0 %419
      %421 = vrot.lane.b32.xlu0 %v203, 24
      %v422 = vpop.permute.xlu0 %421
      %423 = vrot.lane.b32.xlu0 %v205, 24
      %v424 = vpop.permute.xlu0 %423
      %425 = vrot.lane.b32.xlu0 %v207, 24
      %v426 = vpop.permute.xlu0 %425
      %427 = vrot.lane.b32.xlu0 %v209, 24
      %v428 = vpop.permute.xlu0 %427
      %437 = vrot.lane.b32.xlu0 %v236, 28
      %v438 = vpop.permute.xlu0 %437
      %439 = vrot.lane.b32.xlu0 %v239, 28
      %v440 = vpop.permute.xlu0 %439
      %441 = vrot.lane.b32.xlu0 %v242, 28
      %v442 = vpop.permute.xlu0 %441
      %443 = vrot.lane.b32.xlu0 %v245, 28
      %v444 = vpop.permute.xlu0 %443
      %445 = vrot.lane.b32.xlu0 %v248, 28
      %v446 = vpop.permute.xlu0 %445
      %447 = vrot.lane.b32.xlu0 %v251, 28
      %v448 = vpop.permute.xlu0 %447
      %449 = vrot.lane.b32.xlu0 %v281, 28
      %v450 = vpop.permute.xlu0 %449
      %451 = vrot.lane.b32.xlu0 %v289, 28
      %v452 = vpop.permute.xlu0 %451
      %461 = vrot.lane.b32.xlu0 %v261, 32
      %v462 = vpop.permute.xlu0 %461
      %463 = vrot.lane.b32.xlu0 %v264, 32
      %v464 = vpop.permute.xlu0 %463
      %465 = vrot.lane.b32.xlu0 %v267, 32
      %v466 = vpop.permute.xlu0 %465
      %467 = vrot.lane.b32.xlu0 %v270, 32
      %v468 = vpop.permute.xlu0 %467
      %469 = vrot.lane.b32.xlu0 %v273, 32
      %v470 = vpop.permute.xlu0 %469
      %471 = vrot.lane.b32.xlu0 %v276, 32
      %v472 = vpop.permute.xlu0 %471
      %473 = vrot.lane.b32.xlu0 %v284, 32
      %v474 = vpop.permute.xlu0 %473
      %475 = vrot.lane.b32.xlu0 %v292, 32
      %v476 = vpop.permute.xlu0 %475
      %vm485 = vcmask 31744
      %v486 = vsel %vm485, %v191, %v294
      %v487 = vsel %vm485, %v193, %v296
      %v488 = vsel %vm485, %v195, %v298
      %v489 = vsel %vm485, %v197, %v300
      %v490 = vsel %vm485, %v199, %v302
      %v491 = vsel %vm485, %v201, %v304
      %v492 = vsel %vm485, %v203, %v306
      %v493 = vsel %vm485, %v205, %v308
      %vm494 = vcmask 64512
      %v495 = vsel %vm494, %v486, %v318
      %v496 = vsel %vm494, %v487, %v320
      %v497 = vsel %vm494, %v488, %v322
      %v498 = vsel %vm494, %v489, %v324
      %v499 = vsel %vm494, %v490, %v326
      %v500 = vsel %vm494, %v491, %v328
      %v501 = vsel %vm494, %v492, %v330
      %v502 = vsel %vm494, %v493, %v332
      %vm503 = vcmask 97280
      %v504 = vsel %vm503, %v495, %v342
      %v505 = vsel %vm503, %v496, %v344
      %v506 = vsel %vm503, %v497, %v346
      %v507 = vsel %vm503, %v498, %v348
      %v508 = vsel %vm503, %v499, %v350
      %v509 = vsel %vm503, %v500, %v352
      %v510 = vsel %vm503, %v501, %v354
      %v511 = vsel %vm503, %v502, %v356
      %vm512 = vcmask 130048
      %v513 = vsel %vm512, %v504, %v366
      %v514 = vsel %vm512, %v505, %v368
      %v515 = vsel %vm512, %v506, %v370
      %v516 = vsel %vm512, %v507, %v372
      %v517 = vsel %vm512, %v508, %v374
      %v518 = vsel %vm512, %v509, %v376
      %v519 = vsel %vm512, %v510, %v378
      %v520 = vsel %vm512, %v511, %v380
      %vm521 = vcmask 162816
      %v522 = vsel %vm521, %v513, %v390
      %v523 = vsel %vm521, %v514, %v392
      %v524 = vsel %vm521, %v515, %v394
      %v525 = vsel %vm521, %v516, %v396
      %v526 = vsel %vm521, %v517, %v398
      %v527 = vsel %vm521, %v518, %v400
      %v528 = vsel %vm521, %v519, %v402
      %v529 = vsel %vm521, %v520, %v404
      %vm530 = vcmask 195584
      %v531 = vsel %vm530, %v522, %v414
      %v532 = vsel %vm530, %v523, %v416
      %v533 = vsel %vm530, %v524, %v418
      %v534 = vsel %vm530, %v525, %v420
      %v535 = vsel %vm530, %v526, %v422
      %v536 = vsel %vm530, %v527, %v424
      %v537 = vsel %vm530, %v528, %v426
      %v538 = vsel %vm530, %v529, %v428
      %vm539 = vcmask 228352
      %v540 = vsel %vm539, %v531, %v438
      %v541 = vsel %vm539, %v532, %v440
      %v542 = vsel %vm539, %v533, %v442
      %v543 = vsel %vm539, %v534, %v444
      %v544 = vsel %vm539, %v535, %v446
      %v545 = vsel %vm539, %v536, %v448
      %v546 = vsel %vm539, %v537, %v450
      %v547 = vsel %vm539, %v538, %v452
      %vm548 = vcmask 261120
      %v549 = vsel %vm548, %v540, %v462
      %v550 = vsel %vm548, %v541, %v464
      %v551 = vsel %vm548, %v542, %v466
      %v552 = vsel %vm548, %v543, %v468
      %v553 = vsel %vm548, %v544, %v470
      %v554 = vsel %vm548, %v545, %v472
      %v555 = vsel %vm548, %v546, %v474
      %v556 = vsel %vm548, %v547, %v476
      %v557 = vld [vmem:[%s1] sm:$0xff]
      %v558 = vld [vmem:[%s1 + $0x8] sm:$0xff]
      %v559 = vld [vmem:[%s1 + $0x10] sm:$0xff]
      %v560 = vld [vmem:[%s1 + $0x18] sm:$0xff]
      %v561 = vld [vmem:[%s1 + $0x20] sm:$0xf]
      %vm562 = vcmask 293888
      %v564 = vsel %vm562, %v549, 0
      %v567 = vsel %vm562, %v550, 0
      %v570 = vsel %vm562, %v551, 0
      %v573 = vsel %vm562, %v552, 0
      %v576 = vsel %vm562, %v553, 0
      %v579 = vsel %vm562, %v554, 0
      %v582 = vsel %vm562, %v555, 0
      %v585 = vsel %vm562, %v556, 0
      %vm587 = vcmask 1043456
      %v589 = vsel %vm587, %v561, 0
      %591 = vmatprep.subr.mxu0 0.0
      %592 = vmatpush1.msra.mxu0 0.0
      %593 = vmatprep.subr.mxu0 0.0
      %594 = vmatpush1.msra.mxu0 0.0
      %595 = vmatprep.subr.mxu0 0.0
      %596 = vmatpush1.msra.mxu0 0.0
      %597 = vmatprep.subr.mxu0 0.0
      %598 = vmatpush1.msra.mxu0 0.0
      %599 = vmatprep.subr.mxu0 0.0
      %600 = vmatpush1.msra.mxu0 0.0
      %601 = vmatprep.subr.mxu0 0.0
      %602 = vmatpush1.msra.mxu0 0.0
      %603 = vmatprep.subr.mxu0 0.0
      %604 = vmatpush1.msra.mxu0 0.0
      %605 = vmatprep.subr.mxu0 0.0
      %606 = vmatpush1.msra.mxu0 0.0
      %607 = vmatprep.subr.mxu0 0.0
      %608 = vmatpush1.msra.mxu0 0.0
      %609 = vmatprep.subr.mxu0 0.0
      %610 = vmatpush1.msra.mxu0 0.0
      %611 = vmatprep.subr.mxu0 0.0
      %612 = vmatpush1.msra.mxu0 0.0
      %613 = vmatprep.subr.mxu0 0.0
      %614 = vmatpush1.msra.mxu0 %v589
      %615 = vmatprep.subr.mxu0 0.0
      %616 = vmatpush1.msra.mxu0 %v560
      %617 = vmatprep.subr.mxu0 0.0
      %618 = vmatpush1.msra.mxu0 %v559
      %619 = vmatprep.subr.mxu0 0.0
      %620 = vmatpush1.msra.mxu0 %v558
      %621 = vmatprep.subr.mxu0 0.0
      %622 = vmatpush1.msra.mxu0 %v557
      %623 = vmatprep.subr.mxu0 0.0
      %624 = vmatpush2.msra.mxu0 0.0
      %625 = vmatprep.subr.mxu0 0.0
      %626 = vmatpush2.msra.mxu0 0.0
      %627 = vmatprep.subr.mxu0 0.0
      %628 = vmatpush2.msra.mxu0 0.0
      %629 = vmatprep.subr.mxu0 0.0
      %630 = vmatpush2.msra.mxu0 0.0
      %631 = vmatprep.subr.mxu0 0.0
      %632 = vmatpush2.msra.mxu0 0.0
      %633 = vmatprep.subr.mxu0 0.0
      %634 = vmatpush2.msra.mxu0 0.0
      %635 = vmatprep.subr.mxu0 0.0
      %636 = vmatpush2.msra.mxu0 0.0
      %637 = vmatprep.subr.mxu0 0.0
      %638 = vmatpush2.msra.mxu0 0.0
      %639 = vmatprep.subr.mxu0 0.0
      %640 = vmatpush2.msra.mxu0 0.0
      %641 = vmatprep.subr.mxu0 0.0
      %642 = vmatpush2.msra.mxu0 0.0
      %643 = vmatprep.subr.mxu0 0.0
      %644 = vmatpush2.msra.mxu0 0.0
      %645 = vmatprep.subr.mxu0 0.0
      %646 = vmatpush2.msra.mxu0 0.0
      %647 = vmatprep.subr.mxu0 0.0
      %648 = vmatpush2.msra.mxu0 0.0
      %649 = vmatprep.subr.mxu0 0.0
      %650 = vmatpush2.msra.mxu0 0.0
      %651 = vmatprep.subr.mxu0 0.0
      %652 = vmatpush2.msra.mxu0 0.0
      %653 = vmatprep.subr.mxu0 0.0
      %654 = vmatpush2.msra.mxu0 0.0
      %655 = vmatprep.mubr.f32.mxu0 0.0
      %656 = vmatmul.mubr.f32.gmra.mxu0 %v564
      %v657 = vpop.f32.mrf.mxu0
      %v658 = vadd.f32 0.0, %v657
      %v659 = vpop.f32.mrf.mxu0
      %660 = vmatprep.mubr.f32.mxu0 0.0
      %661 = vmatmul.mubr.f32.gmra.mxu0 %v567
      %v662 = vpop.f32.mrf.mxu0
      %v663 = vadd.f32 0.0, %v662
      %v664 = vpop.f32.mrf.mxu0
      %665 = vmatprep.mubr.f32.mxu0 0.0
      %666 = vmatmul.mubr.f32.gmra.mxu0 %v570
      %v667 = vpop.f32.mrf.mxu0
      %v668 = vadd.f32 0.0, %v667
      %v669 = vpop.f32.mrf.mxu0
      %670 = vmatprep.mubr.f32.mxu0 0.0
      %671 = vmatmul.mubr.f32.gmra.mxu0 %v573
      %v672 = vpop.f32.mrf.mxu0
      %v673 = vadd.f32 0.0, %v672
      %v674 = vpop.f32.mrf.mxu0
      %675 = vmatprep.mubr.f32.mxu0 0.0
      %676 = vmatmul.mubr.f32.gmra.mxu0 %v576
      %v677 = vpop.f32.mrf.mxu0
      %v678 = vadd.f32 0.0, %v677
      %v679 = vpop.f32.mrf.mxu0
      %680 = vmatprep.mubr.f32.mxu0 0.0
      %681 = vmatmul.mubr.f32.gmra.mxu0 %v579
      %v682 = vpop.f32.mrf.mxu0
      %v683 = vadd.f32 0.0, %v682
      %v684 = vpop.f32.mrf.mxu0
      %685 = vmatprep.mubr.f32.mxu0 0.0
      %686 = vmatmul.mubr.f32.gmra.mxu0 %v582
      %v687 = vpop.f32.mrf.mxu0
      %v688 = vadd.f32 0.0, %v687
      %v689 = vpop.f32.mrf.mxu0
      %690 = vmatprep.mubr.f32.mxu0 0.0
      %691 = vmatmul.mubr.f32.gmra.mxu0 %v585
      %v692 = vpop.f32.mrf.mxu0
      %v693 = vadd.f32 0.0, %v692
      %v694 = vpop.f32.mrf.mxu0
      %695 = vdwg.mxu0
      %v696 = vsel %vm494, %v658, 0.0
      %v697 = vsel %vm494, %v663, 0.0
      %v698 = vadd.f32 %v696, %v697
      %v699 = vsel %vm494, %v668, 0.0
      %v700 = vadd.f32 %v698, %v699
      %v701 = vsel %vm494, %v673, 0.0
      %v702 = vadd.f32 %v700, %v701
      %v703 = vsel %vm494, %v678, 0.0
      %v704 = vadd.f32 %v702, %v703
      %v705 = vsel %vm494, %v683, 0.0
      %v706 = vadd.f32 %v704, %v705
      %v707 = vsel %vm494, %v688, 0.0
      %v708 = vadd.f32 %v706, %v707
      %v709 = vsel %vm494, %v693, 0.0
      %v710 = vadd.f32 %v708, %v709
      %v711 = vrot.slane %v710, 4
      %v712 = vadd.f32 %v710, %v711
      %v713 = vrot.slane %v712, 2
      %v714 = vadd.f32 %v712, %v713
      %v715 = vrot.slane %v714, 1
      %v716 = vadd.f32 %v714, %v715
      %v717 = vrcp.pop 64.0
      %v718 = vmul.f32 %v716, %v717
      %v719 = vsub.f32 %v658, %v718
      %v720 = vsub.f32 %v663, %v718
      %v721 = vsub.f32 %v668, %v718
      %v722 = vsub.f32 %v673, %v718
      %v723 = vsub.f32 %v678, %v718
      %v724 = vsub.f32 %v683, %v718
      %v725 = vsub.f32 %v688, %v718
      %v726 = vsub.f32 %v693, %v718
      %v727 = vmul.f32 %v719, %v719
      %v728 = vmul.f32 %v720, %v720
      %v729 = vmul.f32 %v721, %v721
      %v730 = vmul.f32 %v722, %v722
      %v731 = vmul.f32 %v723, %v723
      %v732 = vmul.f32 %v724, %v724
      %v733 = vmul.f32 %v725, %v725
      %v734 = vmul.f32 %v726, %v726
      %v735 = vsel %vm494, %v727, 0.0
      %v736 = vsel %vm494, %v728, 0.0
      %v737 = vadd.f32 %v735, %v736
      %v738 = vsel %vm494, %v729, 0.0
      %v739 = vadd.f32 %v737, %v738
      %v740 = vsel %vm494, %v730, 0.0
      %v741 = vadd.f32 %v739, %v740
      %v742 = vsel %vm494, %v731, 0.0
      %v743 = vadd.f32 %v741, %v742
      %v744 = vsel %vm494, %v732, 0.0
      %v745 = vadd.f32 %v743, %v744
      %v746 = vsel %vm494, %v733, 0.0
      %v747 = vadd.f32 %v745, %v746
      %v748 = vsel %vm494, %v734, 0.0
      %v749 = vadd.f32 %v747, %v748
      %v750 = vrot.slane %v749, 4
      %v751 = vadd.f32 %v749, %v750
      %v752 = vrot.slane %v751, 2
      %v753 = vadd.f32 %v751, %v752
      %v754 = vrot.slane %v753, 1
      %v755 = vadd.f32 %v753, %v754
      %v756 = vmul.f32 %v755, %v717
      %v757 = vadd.f32 %v756, 1e-05
      %v758 = vrsqrt.pop %v757
      %v759 = vmul.f32 %v719, %v758
      %v760 = vmul.f32 %v720, %v758
      %v761 = vmul.f32 %v721, %v758
      %v762 = vmul.f32 %v722, %v758
      %v763 = vmul.f32 %v723, %v758
      %v764 = vmul.f32 %v724, %v758
      %v765 = vmul.f32 %v725, %v758
      %v766 = vmul.f32 %v726, %v758
      %v767 = vmax.f32 %v759, 0.0
      %v768 = vmax.f32 %v760, 0.0
      %v769 = vmax.f32 %v761, 0.0
      %v770 = vmax.f32 %v762, 0.0
      %v771 = vmax.f32 %v763, 0.0
      %v772 = vmax.f32 %v764, 0.0
      %v773 = vmax.f32 %v765, 0.0
      %v774 = vmax.f32 %v766, 0.0
      %775 = vst.msk [vmem:[#allocation2] sm:$0xff] %vm494, 0.0
      %vm776 = vcmask 58368
      %777 = vst.msk [vmem:[#allocation2 + $0x8] sm:$0x3] %vm776, 0.0
      %778 = vst.msk [vmem:[#allocation2 + $0x10] sm:$0xff] %vm494, 0.0
      %779 = vst.msk [vmem:[#allocation2 + $0x18] sm:$0x3] %vm776, 0.0
      %780 = vst.msk [vmem:[#allocation2 + $0x20] sm:$0xff] %vm494, 0.0
      %781 = vst.msk [vmem:[#allocation2 + $0x28] sm:$0x3] %vm776, 0.0
      %782 = vst.msk [vmem:[#allocation2 + $0x30] sm:$0xff] %vm494, 0.0
      %783 = vst.msk [vmem:[#allocation2 + $0x38] sm:$0x3] %vm776, 0.0
      %784 = vst.msk [vmem:[#allocation2 + $0x40] sm:$0xff] %vm494, 0.0
      %785 = vst.msk [vmem:[#allocation2 + $0x48] sm:$0x3] %vm776, 0.0
      %786 = vst.msk [vmem:[#allocation2 + $0x50] sm:$0xff] %vm494, 0.0
      %787 = vst.msk [vmem:[#allocation2 + $0x58] sm:$0x3] %vm776, 0.0
      %788 = vst.msk [vmem:[#allocation2 + $0x60] sm:$0xff] %vm494, 0.0
      %789 = vst.msk [vmem:[#allocation2 + $0x68] sm:$0x3] %vm776, 0.0
      %790 = vst.msk [vmem:[#allocation2 + $0x70] sm:$0xff] %vm494, 0.0
      %791 = vst.msk [vmem:[#allocation2 + $0x78] sm:$0x3] %vm776, 0.0
      %792 = vst.msk [vmem:[#allocation2 + $0x80] sm:$0xff] %vm494, 0.0
      %793 = vst.msk [vmem:[#allocation2 + $0x88] sm:$0x3] %vm776, 0.0
      %794 = vst.msk [vmem:[#allocation2 + $0x90] sm:$0xff] %vm494, 0.0
      %795 = vst.msk [vmem:[#allocation2 + $0x98] sm:$0x3] %vm776, 0.0
      %s796 = scalar_lea.vmem [#allocation2], 16
      %797 = vst.msk [vmem:[%s796 + $0x1] sm:$0xff] %vm494, %v767
      %798 = vst.msk [vmem:[%s796 + $0x11] sm:$0xff] %vm494, %v768
      %799 = vst.msk [vmem:[%s796 + $0x21] sm:$0xff] %vm494, %v769
      %800 = vst.msk [vmem:[%s796 + $0x31] sm:$0xff] %vm494, %v770
      %801 = vst.msk [vmem:[%s796 + $0x41] sm:$0xff] %vm494, %v771
      %802 = vst.msk [vmem:[%s796 + $0x51] sm:$0xff] %vm494, %v772
      %803 = vst.msk [vmem:[%s796 + $0x61] sm:$0xff] %vm494, %v773
      %804 = vst.msk [vmem:[%s796 + $0x71] sm:$0xff] %vm494, %v774
      %v805 = vld [vmem:[#allocation2] sm:$0xff]
      %v806 = vld [vmem:[#allocation2 + $0x10] sm:$0xff]
      %v807 = vld [vmem:[#allocation2 + $0x20] sm:$0xff]
      %v808 = vld [vmem:[#allocation2 + $0x30] sm:$0xff]
      %v809 = vld [vmem:[#allocation2 + $0x40] sm:$0xff]
      %v810 = vld [vmem:[#allocation2 + $0x50] sm:$0xff]
      %v811 = vld [vmem:[#allocation2 + $0x60] sm:$0xff]
      %v812 = vld [vmem:[#allocation2 + $0x70] sm:$0xff]
      %v813 = vld [vmem:[#allocation2 + $0x1] sm:$0xff]
      %v814 = vld [vmem:[#allocation2 + $0x11] sm:$0xff]
      %v815 = vld [vmem:[#allocation2 + $0x21] sm:$0xff]
      %v816 = vld [vmem:[#allocation2 + $0x31] sm:$0xff]
      %v817 = vld [vmem:[#allocation2 + $0x41] sm:$0xff]
      %v818 = vld [vmem:[#allocation2 + $0x51] sm:$0xff]
      %v819 = vld [vmem:[#allocation2 + $0x61] sm:$0xff]
      %v820 = vld [vmem:[#allocation2 + $0x71] sm:$0xff]
      %v821 = vld [vmem:[#allocation2 + $0x2] sm:$0xff]
      %v822 = vld [vmem:[#allocation2 + $0x12] sm:$0xff]
      %v823 = vld [vmem:[#allocation2 + $0x22] sm:$0xff]
      %v824 = vld [vmem:[#allocation2 + $0x32] sm:$0xff]
      %v825 = vld [vmem:[#allocation2 + $0x42] sm:$0xff]
      %v826 = vld [vmem:[#allocation2 + $0x52] sm:$0xff]
      %v827 = vld [vmem:[#allocation2 + $0x62] sm:$0xff]
      %v828 = vld [vmem:[#allocation2 + $0x72] sm:$0xff]
      %v829 = vld [vmem:[%s796] sm:$0xff]
      %v830 = vld [vmem:[%s796 + $0x10] sm:$0xff]
      %v831 = vld [vmem:[%s796 + $0x20] sm:$0xff]
      %v832 = vld [vmem:[%s796 + $0x30] sm:$0xff]
      %v833 = vld [vmem:[%s796 + $0x40] sm:$0xff]
      %v834 = vld [vmem:[%s796 + $0x50] sm:$0xff]
      %v835 = vld [vmem:[%s796 + $0x60] sm:$0xff]
      %v836 = vld [vmem:[%s796 + $0x70] sm:$0xff]
      %v837 = vld [vmem:[%s796 + $0x1] sm:$0xff]
      %v838 = vld [vmem:[%s796 + $0x11] sm:$0xff]
      %v839 = vld [vmem:[%s796 + $0x21] sm:$0xff]
      %v840 = vld [vmem:[%s796 + $0x31] sm:$0xff]
      %v841 = vld [vmem:[%s796 + $0x41] sm:$0xff]
      %v842 = vld [vmem:[%s796 + $0x51] sm:$0xff]
      %v843 = vld [vmem:[%s796 + $0x61] sm:$0xff]
      %v844 = vld [vmem:[%s796 + $0x71] sm:$0xff]
      %v845 = vld [vmem:[%s796 + $0x2] sm:$0xff]
      %v846 = vld [vmem:[%s796 + $0x12] sm:$0xff]
      %v847 = vld [vmem:[%s796 + $0x22] sm:$0xff]
      %v848 = vld [vmem:[%s796 + $0x32] sm:$0xff]
      %v849 = vld [vmem:[%s796 + $0x42] sm:$0xff]
      %v850 = vld [vmem:[%s796 + $0x52] sm:$0xff]
      %v851 = vld [vmem:[%s796 + $0x62] sm:$0xff]
      %v852 = vld [vmem:[%s796 + $0x72] sm:$0xff]
      %s853 = scalar_lea.vmem [#allocation2], 32
      %v854 = vld [vmem:[%s853] sm:$0xff]
      %v855 = vld [vmem:[%s853 + $0x10] sm:$0xff]
      %v856 = vld [vmem:[%s853 + $0x20] sm:$0xff]
      %v857 = vld [vmem:[%s853 + $0x30] sm:$0xff]
      %v858 = vld [vmem:[%s853 + $0x40] sm:$0xff]
      %v859 = vld [vmem:[%s853 + $0x50] sm:$0xff]
      %v860 = vld [vmem:[%s853 + $0x60] sm:$0xff]
      %v861 = vld [vmem:[%s853 + $0x70] sm:$0xff]
      %v862 = vld [vmem:[%s853 + $0x1] sm:$0xff]
      %v863 = vld [vmem:[%s853 + $0x11] sm:$0xff]
      %v864 = vld [vmem:[%s853 + $0x21] sm:$0xff]
      %v865 = vld [vmem:[%s853 + $0x31] sm:$0xff]
      %v866 = vld [vmem:[%s853 + $0x41] sm:$0xff]
      %v867 = vld [vmem:[%s853 + $0x51] sm:$0xff]
      %v868 = vld [vmem:[%s853 + $0x61] sm:$0xff]
      %v869 = vld [vmem:[%s853 + $0x71] sm:$0xff]
      %v870 = vld [vmem:[%s853 + $0x2] sm:$0xff]
      %v871 = vld [vmem:[%s853 + $0x12] sm:$0xff]
      %v872 = vld [vmem:[%s853 + $0x22] sm:$0xff]
      %v873 = vld [vmem:[%s853 + $0x32] sm:$0xff]
      %v874 = vld [vmem:[%s853 + $0x42] sm:$0xff]
      %v875 = vld [vmem:[%s853 + $0x52] sm:$0xff]
      %v876 = vld [vmem:[%s853 + $0x62] sm:$0xff]
      %v877 = vld [vmem:[%s853 + $0x72] sm:$0xff]
      %886 = vrot.lane.b32.xlu0 %v813, 8
      %v887 = vpop.permute.xlu0 %886
      %888 = vrot.lane.b32.xlu0 %v814, 8
      %v889 = vpop.permute.xlu0 %888
      %890 = vrot.lane.b32.xlu0 %v815, 8
      %v891 = vpop.permute.xlu0 %890
      %892 = vrot.lane.b32.xlu0 %v816, 8
      %v893 = vpop.permute.xlu0 %892
      %894 = vrot.lane.b32.xlu0 %v817, 8
      %v895 = vpop.permute.xlu0 %894
      %896 = vrot.lane.b32.xlu0 %v818, 8
      %v897 = vpop.permute.xlu0 %896
      %898 = vrot.lane.b32.xlu0 %v819, 8
      %v899 = vpop.permute.xlu0 %898
      %900 = vrot.lane.b32.xlu0 %v820, 8
      %v901 = vpop.permute.xlu0 %900
      %918 = vrot.lane.b32.xlu0 %v821, 16
      %v919 = vpop.permute.xlu0 %918
      %920 = vrot.lane.b32.xlu0 %v822, 16
      %v921 = vpop.permute.xlu0 %920
      %922 = vrot.lane.b32.xlu0 %v823, 16
      %v923 = vpop.permute.xlu0 %922
      %924 = vrot.lane.b32.xlu0 %v824, 16
      %v925 = vpop.permute.xlu0 %924
      %926 = vrot.lane.b32.xlu0 %v825, 16
      %v927 = vpop.permute.xlu0 %926
      %928 = vrot.lane.b32.xlu0 %v826, 16
      %v929 = vpop.permute.xlu0 %928
      %930 = vrot.lane.b32.xlu0 %v827, 16
      %v931 = vpop.permute.xlu0 %930
      %932 = vrot.lane.b32.xlu0 %v828, 16
      %v933 = vpop.permute.xlu0 %932
      %950 = vrot.lane.b32.xlu0 %v829, 24
      %v951 = vpop.permute.xlu0 %950
      %952 = vrot.lane.b32.xlu0 %v830, 24
      %v953 = vpop.permute.xlu0 %952
      %954 = vrot.lane.b32.xlu0 %v831, 24
      %v955 = vpop.permute.xlu0 %954
      %956 = vrot.lane.b32.xlu0 %v832, 24
      %v957 = vpop.permute.xlu0 %956
      %958 = vrot.lane.b32.xlu0 %v833, 24
      %v959 = vpop.permute.xlu0 %958
      %960 = vrot.lane.b32.xlu0 %v834, 24
      %v961 = vpop.permute.xlu0 %960
      %962 = vrot.lane.b32.xlu0 %v835, 24
      %v963 = vpop.permute.xlu0 %962
      %964 = vrot.lane.b32.xlu0 %v836, 24
      %v965 = vpop.permute.xlu0 %964
      %982 = vrot.lane.b32.xlu0 %v837, 32
      %v983 = vpop.permute.xlu0 %982
      %984 = vrot.lane.b32.xlu0 %v838, 32
      %v985 = vpop.permute.xlu0 %984
      %986 = vrot.lane.b32.xlu0 %v839, 32
      %v987 = vpop.permute.xlu0 %986
      %988 = vrot.lane.b32.xlu0 %v840, 32
      %v989 = vpop.permute.xlu0 %988
      %990 = vrot.lane.b32.xlu0 %v841, 32
      %v991 = vpop.permute.xlu0 %990
      %992 = vrot.lane.b32.xlu0 %v842, 32
      %v993 = vpop.permute.xlu0 %992
      %994 = vrot.lane.b32.xlu0 %v843, 32
      %v995 = vpop.permute.xlu0 %994
      %996 = vrot.lane.b32.xlu0 %v844, 32
      %v997 = vpop.permute.xlu0 %996
      %1014 = vrot.lane.b32.xlu0 %v845, 40
      %v1015 = vpop.permute.xlu0 %1014
      %1016 = vrot.lane.b32.xlu0 %v846, 40
      %v1017 = vpop.permute.xlu0 %1016
      %1018 = vrot.lane.b32.xlu0 %v847, 40
      %v1019 = vpop.permute.xlu0 %1018
      %1020 = vrot.lane.b32.xlu0 %v848, 40
      %v1021 = vpop.permute.xlu0 %1020
      %1022 = vrot.lane.b32.xlu0 %v849, 40
      %v1023 = vpop.permute.xlu0 %1022
      %1024 = vrot.lane.b32.xlu0 %v850, 40
      %v1025 = vpop.permute.xlu0 %1024
      %1026 = vrot.lane.b32.xlu0 %v851, 40
      %v1027 = vpop.permute.xlu0 %1026
      %1028 = vrot.lane.b32.xlu0 %v852, 40
      %v1029 = vpop.permute.xlu0 %1028
      %1046 = vrot.lane.b32.xlu0 %v854, 48
      %v1047 = vpop.permute.xlu0 %1046
      %1048 = vrot.lane.b32.xlu0 %v855, 48
      %v1049 = vpop.permute.xlu0 %1048
      %1050 = vrot.lane.b32.xlu0 %v856, 48
      %v1051 = vpop.permute.xlu0 %1050
      %1052 = vrot.lane.b32.xlu0 %v857, 48
      %v1053 = vpop.permute.xlu0 %1052
      %1054 = vrot.lane.b32.xlu0 %v858, 48
      %v1055 = vpop.permute.xlu0 %1054
      %1056 = vrot.lane.b32.xlu0 %v859, 48
      %v1057 = vpop.permute.xlu0 %1056
      %1058 = vrot.lane.b32.xlu0 %v860, 48
      %v1059 = vpop.permute.xlu0 %1058
      %1060 = vrot.lane.b32.xlu0 %v861, 48
      %v1061 = vpop.permute.xlu0 %1060
      %1078 = vrot.lane.b32.xlu0 %v862, 56
      %v1079 = vpop.permute.xlu0 %1078
      %1080 = vrot.lane.b32.xlu0 %v863, 56
      %v1081 = vpop.permute.xlu0 %1080
      %1082 = vrot.lane.b32.xlu0 %v864, 56
      %v1083 = vpop.permute.xlu0 %1082
      %1084 = vrot.lane.b32.xlu0 %v865, 56
      %v1085 = vpop.permute.xlu0 %1084
      %1086 = vrot.lane.b32.xlu0 %v866, 56
      %v1087 = vpop.permute.xlu0 %1086
      %1088 = vrot.lane.b32.xlu0 %v867, 56
      %v1089 = vpop.permute.xlu0 %1088
      %1090 = vrot.lane.b32.xlu0 %v868, 56
      %v1091 = vpop.permute.xlu0 %1090
      %1092 = vrot.lane.b32.xlu0 %v869, 56
      %v1093 = vpop.permute.xlu0 %1092
      %1110 = vrot.lane.b32.xlu0 %v870, 64
      %v1111 = vpop.permute.xlu0 %1110
      %1112 = vrot.lane.b32.xlu0 %v871, 64
      %v1113 = vpop.permute.xlu0 %1112
      %1114 = vrot.lane.b32.xlu0 %v872, 64
      %v1115 = vpop.permute.xlu0 %1114
      %1116 = vrot.lane.b32.xlu0 %v873, 64
      %v1117 = vpop.permute.xlu0 %1116
      %1118 = vrot.lane.b32.xlu0 %v874, 64
      %v1119 = vpop.permute.xlu0 %1118
      %1120 = vrot.lane.b32.xlu0 %v875, 64
      %v1121 = vpop.permute.xlu0 %1120
      %1122 = vrot.lane.b32.xlu0 %v876, 64
      %v1123 = vpop.permute.xlu0 %1122
      %1124 = vrot.lane.b32.xlu0 %v877, 64
      %v1125 = vpop.permute.xlu0 %1124
      %v1134 = vsel %vm494, %v805, %v887
      %v1135 = vsel %vm494, %v806, %v889
      %v1136 = vsel %vm494, %v807, %v891
      %v1137 = vsel %vm494, %v808, %v893
      %v1138 = vsel %vm494, %v809, %v895
      %v1139 = vsel %vm494, %v810, %v897
      %v1140 = vsel %vm494, %v811, %v899
      %v1141 = vsel %vm494, %v812, %v901
      %v1142 = vsel %vm512, %v1134, %v919
      %v1143 = vsel %vm512, %v1135, %v921
      %v1144 = vsel %vm512, %v1136, %v923
      %v1145 = vsel %vm512, %v1137, %v925
      %v1146 = vsel %vm512, %v1138, %v927
      %v1147 = vsel %vm512, %v1139, %v929
      %v1148 = vsel %vm512, %v1140, %v931
      %v1149 = vsel %vm512, %v1141, %v933
      %v1150 = vsel %vm530, %v1142, %v951
      %v1151 = vsel %vm530, %v1143, %v953
      %v1152 = vsel %vm530, %v1144, %v955
      %v1153 = vsel %vm530, %v1145, %v957
      %v1154 = vsel %vm530, %v1146, %v959
      %v1155 = vsel %vm530, %v1147, %v961
      %v1156 = vsel %vm530, %v1148, %v963
      %v1157 = vsel %vm530, %v1149, %v965
      %v1158 = vsel %vm548, %v1150, %v983
      %v1159 = vsel %vm548, %v1151, %v985
      %v1160 = vsel %vm548, %v1152, %v987
      %v1161 = vsel %vm548, %v1153, %v989
      %v1162 = vsel %vm548, %v1154, %v991
      %v1163 = vsel %vm548, %v1155, %v993
      %v1164 = vsel %vm548, %v1156, %v995
      %v1165 = vsel %vm548, %v1157, %v997
      %vm1166 = vcmask 326656
      %v1167 = vsel %vm1166, %v1158, %v1015
      %v1168 = vsel %vm1166, %v1159, %v1017
      %v1169 = vsel %vm1166, %v1160, %v1019
      %v1170 = vsel %vm1166, %v1161, %v1021
      %v1171 = vsel %vm1166, %v1162, %v1023
      %v1172 = vsel %vm1166, %v1163, %v1025
      %v1173 = vsel %vm1166, %v1164, %v1027
      %v1174 = vsel %vm1166, %v1165, %v1029
      %vm1175 = vcmask 392192
      %v1176 = vsel %vm1175, %v1167, %v1047
      %v1177 = vsel %vm1175, %v1168, %v1049
      %v1178 = vsel %vm1175, %v1169, %v1051
      %v1179 = vsel %vm1175, %v1170, %v1053
      %v1180 = vsel %vm1175, %v1171, %v1055
      %v1181 = vsel %vm1175, %v1172, %v1057
      %v1182 = vsel %vm1175, %v1173, %v1059
      %v1183 = vsel %vm1175, %v1174, %v1061
      %vm1184 = vcmask 457728
      %v1185 = vsel %vm1184, %v1176, %v1079
      %v1186 = vsel %vm1184, %v1177, %v1081
      %v1187 = vsel %vm1184, %v1178, %v1083
      %v1188 = vsel %vm1184, %v1179, %v1085
      %v1189 = vsel %vm1184, %v1180, %v1087
      %v1190 = vsel %vm1184, %v1181, %v1089
      %v1191 = vsel %vm1184, %v1182, %v1091
      %v1192 = vsel %vm1184, %v1183, %v1093
      %vm1193 = vcmask 523264
      %v1194 = vsel %vm1193, %v1185, %v1111
      %v1195 = vsel %vm1193, %v1186, %v1113
      %v1196 = vsel %vm1193, %v1187, %v1115
      %v1197 = vsel %vm1193, %v1188, %v1117
      %v1198 = vsel %vm1193, %v1189, %v1119
      %v1199 = vsel %vm1193, %v1190, %v1121
      %v1200 = vsel %vm1193, %v1191, %v1123
      %v1201 = vsel %vm1193, %v1192, %v1125
      %v1202 = vld [vmem:[%s2] sm:$0xff]
      %v1203 = vld [vmem:[%s2 + $0x8] sm:$0xff]
      %v1204 = vld [vmem:[%s2 + $0x10] sm:$0xff]
      %v1205 = vld [vmem:[%s2 + $0x18] sm:$0xff]
      %v1206 = vld [vmem:[%s2 + $0x20] sm:$0xff]
      %v1207 = vld [vmem:[%s2 + $0x28] sm:$0xff]
      %v1208 = vld [vmem:[%s2 + $0x30] sm:$0xff]
      %v1209 = vld [vmem:[%s2 + $0x38] sm:$0xff]
      %v1210 = vld [vmem:[%s2 + $0x40] sm:$0xff]
      %vm1211 = vcmask 588800
      %v1213 = vsel %vm1211, %v1194, 0
      %v1216 = vsel %vm1211, %v1195, 0
      %v1219 = vsel %vm1211, %v1196, 0
      %v1222 = vsel %vm1211, %v1197, 0
      %v1225 = vsel %vm1211, %v1198, 0
      %v1228 = vsel %vm1211, %v1199, 0
      %v1231 = vsel %vm1211, %v1200, 0
      %v1234 = vsel %vm1211, %v1201, 0
      %1236 = vmatprep.subr.mxu0 0.0
      %1237 = vmatpush1.msra.mxu0 0.0
      %1238 = vmatprep.subr.mxu0 0.0
      %1239 = vmatpush1.msra.mxu0 0.0
      %1240 = vmatprep.subr.mxu0 0.0
      %1241 = vmatpush1.msra.mxu0 0.0
      %1242 = vmatprep.subr.mxu0 0.0
      %1243 = vmatpush1.msra.mxu0 0.0
      %1244 = vmatprep.subr.mxu0 0.0
      %1245 = vmatpush1.msra.mxu0 0.0
      %1246 = vmatprep.subr.mxu0 0.0
      %1247 = vmatpush1.msra.mxu0 0.0
      %1248 = vmatprep.subr.mxu0 0.0
      %1249 = vmatpush1.msra.mxu0 0.0
      %1250 = vmatprep.subr.mxu0 0.0
      %1251 = vmatpush1.msra.mxu0 %v1210
      %1252 = vmatprep.subr.mxu0 0.0
      %1253 = vmatpush1.msra.mxu0 %v1209
      %1254 = vmatprep.subr.mxu0 0.0
      %1255 = vmatpush1.msra.mxu0 %v1208
      %1256 = vmatprep.subr.mxu0 0.0
      %1257 = vmatpush1.msra.mxu0 %v1207
      %1258 = vmatprep.subr.mxu0 0.0
      %1259 = vmatpush1.msra.mxu0 %v1206
      %1260 = vmatprep.subr.mxu0 0.0
      %1261 = vmatpush1.msra.mxu0 %v1205
      %1262 = vmatprep.subr.mxu0 0.0
      %1263 = vmatpush1.msra.mxu0 %v1204
      %1264 = vmatprep.subr.mxu0 0.0
      %1265 = vmatpush1.msra.mxu0 %v1203
      %1266 = vmatprep.subr.mxu0 0.0
      %1267 = vmatpush1.msra.mxu0 %v1202
      %1268 = vmatprep.subr.mxu0 0.0
      %1269 = vmatpush2.msra.mxu0 0.0
      %1270 = vmatprep.subr.mxu0 0.0
      %1271 = vmatpush2.msra.mxu0 0.0
      %1272 = vmatprep.subr.mxu0 0.0
      %1273 = vmatpush2.msra.mxu0 0.0
      %1274 = vmatprep.subr.mxu0 0.0
      %1275 = vmatpush2.msra.mxu0 0.0
      %1276 = vmatprep.subr.mxu0 0.0
      %1277 = vmatpush2.msra.mxu0 0.0
      %1278 = vmatprep.subr.mxu0 0.0
      %1279 = vmatpush2.msra.mxu0 0.0
      %1280 = vmatprep.subr.mxu0 0.0
      %1281 = vmatpush2.msra.mxu0 0.0
      %1282 = vmatprep.subr.mxu0 0.0
      %1283 = vmatpush2.msra.mxu0 0.0
      %1284 = vmatprep.subr.mxu0 0.0
      %1285 = vmatpush2.msra.mxu0 0.0
      %1286 = vmatprep.subr.mxu0 0.0
      %1287 = vmatpush2.msra.mxu0 0.0
      %1288 = vmatprep.subr.mxu0 0.0
      %1289 = vmatpush2.msra.mxu0 0.0
      %1290 = vmatprep.subr.mxu0 0.0
      %1291 = vmatpush2.msra.mxu0 0.0
      %1292 = vmatprep.subr.mxu0 0.0
      %1293 = vmatpush2.msra.mxu0 0.0
      %1294 = vmatprep.subr.mxu0 0.0
      %1295 = vmatpush2.msra.mxu0 0.0
      %1296 = vmatprep.subr.mxu0 0.0
      %1297 = vmatpush2.msra.mxu0 0.0
      %1298 = vmatprep.subr.mxu0 0.0
      %1299 = vmatpush2.msra.mxu0 0.0
      %1300 = vmatprep.mubr.f32.mxu0 0.0
      %1301 = vmatmul.mubr.f32.gmra.mxu0 %v1213
      %v1302 = vpop.f32.mrf.mxu0
      %v1303 = vadd.f32 0.0, %v1302
      %v1304 = vpop.f32.mrf.mxu0
      %1305 = vmatprep.mubr.f32.mxu0 0.0
      %1306 = vmatmul.mubr.f32.gmra.mxu0 %v1216
      %v1307 = vpop.f32.mrf.mxu0
      %v1308 = vadd.f32 0.0, %v1307
      %v1309 = vpop.f32.mrf.mxu0
      %1310 = vmatprep.mubr.f32.mxu0 0.0
      %1311 = vmatmul.mubr.f32.gmra.mxu0 %v1219
      %v1312 = vpop.f32.mrf.mxu0
      %v1313 = vadd.f32 0.0, %v1312
      %v1314 = vpop.f32.mrf.mxu0
      %1315 = vmatprep.mubr.f32.mxu0 0.0
      %1316 = vmatmul.mubr.f32.gmra.mxu0 %v1222
      %v1317 = vpop.f32.mrf.mxu0
      %v1318 = vadd.f32 0.0, %v1317
      %v1319 = vpop.f32.mrf.mxu0
      %1320 = vmatprep.mubr.f32.mxu0 0.0
      %1321 = vmatmul.mubr.f32.gmra.mxu0 %v1225
      %v1322 = vpop.f32.mrf.mxu0
      %v1323 = vadd.f32 0.0, %v1322
      %v1324 = vpop.f32.mrf.mxu0
      %1325 = vmatprep.mubr.f32.mxu0 0.0
      %1326 = vmatmul.mubr.f32.gmra.mxu0 %v1228
      %v1327 = vpop.f32.mrf.mxu0
      %v1328 = vadd.f32 0.0, %v1327
      %v1329 = vpop.f32.mrf.mxu0
      %1330 = vmatprep.mubr.f32.mxu0 0.0
      %1331 = vmatmul.mubr.f32.gmra.mxu0 %v1231
      %v1332 = vpop.f32.mrf.mxu0
      %v1333 = vadd.f32 0.0, %v1332
      %v1334 = vpop.f32.mrf.mxu0
      %1335 = vmatprep.mubr.f32.mxu0 0.0
      %1336 = vmatmul.mubr.f32.gmra.mxu0 %v1234
      %v1337 = vpop.f32.mrf.mxu0
      %v1338 = vadd.f32 0.0, %v1337
      %v1339 = vpop.f32.mrf.mxu0
      %1340 = vdwg.mxu0
      %v1341 = vsel %vm548, %v1303, 0.0
      %v1342 = vsel %vm548, %v1308, 0.0
      %v1343 = vadd.f32 %v1341, %v1342
      %v1344 = vsel %vm548, %v1313, 0.0
      %v1345 = vadd.f32 %v1343, %v1344
      %v1346 = vsel %vm548, %v1318, 0.0
      %v1347 = vadd.f32 %v1345, %v1346
      %v1348 = vsel %vm548, %v1323, 0.0
      %v1349 = vadd.f32 %v1347, %v1348
      %v1350 = vsel %vm548, %v1328, 0.0
      %v1351 = vadd.f32 %v1349, %v1350
      %v1352 = vsel %vm548, %v1333, 0.0
      %v1353 = vadd.f32 %v1351, %v1352
      %v1354 = vsel %vm548, %v1338, 0.0
      %v1355 = vadd.f32 %v1353, %v1354
      %v1356 = vrot.slane %v1355, 4
      %v1357 = vadd.f32 %v1355, %v1356
      %v1358 = vrot.slane %v1357, 2
      %v1359 = vadd.f32 %v1357, %v1358
      %v1360 = vrot.slane %v1359, 1
      %v1361 = vadd.f32 %v1359, %v1360
      %1363 = vrot.lane.b32.xlu0 %v1361, 120
      %v1364 = vpop.permute.xlu0 %1363
      %v1366 = vadd.f32 %v1361, %v1364
      %1367 = vrot.lane.b32.xlu0 %v1361, 112
      %v1368 = vpop.permute.xlu0 %1367
      %v1370 = vadd.f32 %v1366, %v1368
      %1371 = vrot.lane.b32.xlu0 %v1361, 104
      %v1372 = vpop.permute.xlu0 %1371
      %v1374 = vadd.f32 %v1370, %v1372
      %v1375 = vmul.f32 %v1374, 0.00390625
      %1377 = vrot.lane.b32.xlu0 %v1375, 8
      %v1378 = vpop.permute.xlu0 %1377
      %1380 = vrot.lane.b32.xlu0 %v1375, 16
      %v1381 = vpop.permute.xlu0 %1380
      %1383 = vrot.lane.b32.xlu0 %v1375, 24
      %v1384 = vpop.permute.xlu0 %1383
      %v1386 = vsel %vm494, %v1375, %v1378
      %v1387 = vsel %vm512, %v1386, %v1381
      %v1388 = vsel %vm530, %v1387, %v1384
      %v1389 = vlaneseq
      %v1390 = vshrl.u32 %v1389, 7
      %v1391 = vsub.s32 0, %v1390
      %v1392 = vrot.slane %v1388, %v1391
      %v1393 = vsub.f32 %v1303, %v1392
      %v1394 = vsub.f32 %v1308, %v1392
      %v1395 = vsub.f32 %v1313, %v1392
      %v1396 = vsub.f32 %v1318, %v1392
      %v1397 = vsub.f32 %v1323, %v1392
      %v1398 = vsub.f32 %v1328, %v1392
      %v1399 = vsub.f32 %v1333, %v1392
      %v1400 = vsub.f32 %v1338, %v1392
      %v1401 = vmul.f32 %v1393, %v1393
      %v1402 = vmul.f32 %v1394, %v1394
      %v1403 = vmul.f32 %v1395, %v1395
      %v1404 = vmul.f32 %v1396, %v1396
      %v1405 = vmul.f32 %v1397, %v1397
      %v1406 = vmul.f32 %v1398, %v1398
      %v1407 = vmul.f32 %v1399, %v1399
      %v1408 = vmul.f32 %v1400, %v1400
      %v1409 = vsel %vm548, %v1401, 0.0
      %v1410 = vsel %vm548, %v1402, 0.0
      %v1411 = vadd.f32 %v1409, %v1410
      %v1412 = vsel %vm548, %v1403, 0.0
      %v1413 = vadd.f32 %v1411, %v1412
      %v1414 = vsel %vm548, %v1404, 0.0
      %v1415 = vadd.f32 %v1413, %v1414
      %v1416 = vsel %vm548, %v1405, 0.0
      %v1417 = vadd.f32 %v1415, %v1416
      %v1418 = vsel %vm548, %v1406, 0.0
      %v1419 = vadd.f32 %v1417, %v1418
      %v1420 = vsel %vm548, %v1407, 0.0
      %v1421 = vadd.f32 %v1419, %v1420
      %v1422 = vsel %vm548, %v1408, 0.0
      %v1423 = vadd.f32 %v1421, %v1422
      %v1424 = vrot.slane %v1423, 4
      %v1425 = vadd.f32 %v1423, %v1424
      %v1426 = vrot.slane %v1425, 2
      %v1427 = vadd.f32 %v1425, %v1426
      %v1428 = vrot.slane %v1427, 1
      %v1429 = vadd.f32 %v1427, %v1428
      %1431 = vrot.lane.b32.xlu0 %v1429, 120
      %v1432 = vpop.permute.xlu0 %1431
      %v1434 = vadd.f32 %v1429, %v1432
      %1435 = vrot.lane.b32.xlu0 %v1429, 112
      %v1436 = vpop.permute.xlu0 %1435
      %v1438 = vadd.f32 %v1434, %v1436
      %1439 = vrot.lane.b32.xlu0 %v1429, 104
      %v1440 = vpop.permute.xlu0 %1439
      %v1442 = vadd.f32 %v1438, %v1440
      %v1443 = vmul.f32 %v1442, 0.00390625
      %v1444 = vadd.f32 %v1443, 1e-05
      %v1445 = vrsqrt.pop %v1444
      %1447 = vrot.lane.b32.xlu0 %v1445, 8
      %v1448 = vpop.permute.xlu0 %1447
      %1450 = vrot.lane.b32.xlu0 %v1445, 16
      %v1451 = vpop.permute.xlu0 %1450
      %1453 = vrot.lane.b32.xlu0 %v1445, 24
      %v1454 = vpop.permute.xlu0 %1453
      %v1456 = vsel %vm494, %v1445, %v1448
      %v1457 = vsel %vm512, %v1456, %v1451
      %v1458 = vsel %vm530, %v1457, %v1454
      %v1459 = vlaneseq
      %v1460 = vshrl.u32 %v1459, 7
      %v1461 = vsub.s32 0, %v1460
      %v1462 = vrot.slane %v1458, %v1461
      %v1463 = vmul.f32 %v1393, %v1462
      %v1464 = vmul.f32 %v1394, %v1462
      %v1465 = vmul.f32 %v1395, %v1462
      %v1466 = vmul.f32 %v1396, %v1462
      %v1467 = vmul.f32 %v1397, %v1462
      %v1468 = vmul.f32 %v1398, %v1462
      %v1469 = vmul.f32 %v1399, %v1462
      %v1470 = vmul.f32 %v1400, %v1462
      %1471 = vst.msk [vmem:[%s170] sm:$0xff] %vm548, %v1463
      %1472 = vst.msk [vmem:[%s170 + $0x8] sm:$0xff] %vm548, %v1464
      %1473 = vst.msk [vmem:[%s170 + $0x10] sm:$0xff] %vm548, %v1465
      %1474 = vst.msk [vmem:[%s170 + $0x18] sm:$0xff] %vm548, %v1466
      %1475 = vst.msk [vmem:[%s170 + $0x20] sm:$0xff] %vm548, %v1467
      %1476 = vst.msk [vmem:[%s170 + $0x28] sm:$0xff] %vm548, %v1468
      %1477 = vst.msk [vmem:[%s170 + $0x30] sm:$0xff] %vm548, %v1469
      %1478 = vst.msk [vmem:[%s170 + $0x38] sm:$0xff] %vm548, %v1470
      %p1479 = scmp.lt.s32.totalorder %s14, 1
      %s1480 = scalar_select %p1479, %s14, 1
      %s1481 = smul.addr %s1480, 8
      %s1482 = smul.addr %s1481, 8
      %s1483 = scalar_lea.vmem %s3, %s1482
      // Predicated region
      $region33: #{tpu_custom_call.1} parent=31 // pred_check
        %p1484 = pneg %p100
      $region34: #{tpu_custom_call.1} parent=31 // pred_check_branch
        %1486 = sbr.rel (%p1484) target = $region36
      $region35: #{tpu_custom_call.1} parent=31 // pred_region
        _
      $region36: #{tpu_custom_call.1} parent=31 // pred_fallthru
        _
    $region32: #{tpu_custom_call.1} parent=5 // pred_fallthru
      _
    %p1487 = scmp.le.s32.totalorder 2, %s9
    // Predicated region
    $region37: #{tpu_custom_call.1} parent=5 // pred_check
      %p1488 = pneg %p1487
    $region38: #{tpu_custom_call.1} parent=5 // pred_check_branch
      %1490 = sbr.rel (%p1488) target = $region40
    $region39: #{tpu_custom_call.1} parent=5 // pred_region
      %s1491 = ssub.s32 %s9, 2
      // Predicated region
      $region41: #{tpu_custom_call.1} parent=39 // pred_check
        %p1492 = pneg %p106
      $region42: #{tpu_custom_call.1} parent=39 // pred_check_branch
        %1494 = sbr.rel (%p1492) target = $region44
      $region43: #{tpu_custom_call.1} parent=39 // pred_region
        %p1495 = scmp.lt.s32.totalorder %s15, 1
        %s1496 = scalar_select %p1495, %s15, 1
        %s1497 = smul.addr %s1496, 8
        %s1498 = smul.addr %s1497, 8
        %s1499 = scalar_lea.vmem %s3, %s1498
      $region44: #{tpu_custom_call.1} parent=39 // pred_fallthru
        _
    $region40: #{tpu_custom_call.1} parent=5 // pred_fallthru
      _
  $region6: #{tpu_custom_call.1} parent=0 // loop_footer
    %s13 = sadd.s32 1, %s9
  $region7: #{tpu_custom_call.1} parent=0 // loop_footer_branch
    %8 = sbr.rel target = $region3
  $region8: #{tpu_custom_call.1} parent=0 // loop_exit
    _

</llo_original>
